<compile_context>
chip_gen: v7x
topology: tpu7x:2x2x1
jax: 0.10.0
libtpu: 0.0.40
codegen_flags: <defaults>
</compile_context>

<pallas_src>
import functools

import jax
import jax.numpy as jnp
from jax.experimental import pallas as pl
from jax.experimental.pallas import tpu as pltpu

F32 = jnp.float32
BF16 = jnp.bfloat16

_TM_CAP = 512            # row-tile cap
_TN_CAP = 512            # output-channel tile cap (multiple of 128)
_TK_CAP = 512            # K tile cap for dense matmuls
_GCONV_CHUNK = 128       # rows per in-register accumulator chunk (fused gconv)
_VMEM_LIMIT = 48 * 1024 * 1024   # stays inside v7x's 64 MiB VMEM
_CARDINALITY = 32


def _ceil_to(x, m):
    return ((x + m - 1) // m) * m


def _pick_tm(m, cap=_TM_CAP):
    """Row tile + padded row count.  Prefer zero padding (avoids an HBM pad
    copy of the activation), then fewer tiles; single tiles stay exact when
    8-aligned, otherwise round up to 16 (clean bf16 packed stores)."""
    if m <= cap:
        mp = m if m % 8 == 0 else _ceil_to(m, 16)
        return mp, mp
    best = None
    nmin = -(-m // cap)
    for ntiles in (nmin, nmin + 1):
        cands = [_ceil_to(-(-m // ntiles), 16)]
        t8 = _ceil_to(-(-m // ntiles), 8)
        if m % t8 == 0:
            cands.append(t8)
        for t in cands:
            mp = _ceil_to(m, t)
            key = (mp - m, mp // t, t)
            if best is None or key < best[0]:
                best = (key, t, mp)
    return best[1], best[2]


def _pad_k(k):
    if k > _TK_CAP:
        return _ceil_to(k, _TK_CAP)
    if k % 128 == 0:
        return k
    if k < 128:
        return _ceil_to(k, 8)
    return _ceil_to(k, 16)          # e.g. stem: 147 -> 160 (not 256)


def _pad_n(n):
    if n <= 128:
        return _ceil_to(n, 8)
    np_ = _ceil_to(n, 128)
    if np_ > _TN_CAP:
        np_ = _ceil_to(np_, _TN_CAP)
    return np_


def _maybe_buffered(block_shape, index_map, nblocks):
    """Activation BlockSpec with 3-deep buffering on HBM-bound streams; falls
    back cleanly if pipeline_mode/Buffered is unavailable."""
    if nblocks >= 4 and hasattr(pl, "Buffered"):
        try:
            return pl.BlockSpec(block_shape, index_map,
                                pipeline_mode=pl.Buffered(3))
        except TypeError:
            pass
    return pl.BlockSpec(block_shape, index_map)


# ----------------------------------------------------------------------------
# Pallas kernels
# ----------------------------------------------------------------------------

def _mm_kernel(a_ref, b_ref, s_ref, c_ref, o_ref, acc_ref, *, relu):
    """o = act((a @ b) * scale + bias), accumulated over the K grid axis."""
    k = pl.program_id(2)

    @pl.when(k == 0)
    def _():
        acc_ref[...] = jnp.zeros_like(acc_ref)

    acc_ref[...] += jnp.dot(a_ref[...], b_ref[...],
                            preferred_element_type=jnp.float32)

    @pl.when(k == pl.num_programs(2) - 1)
    def _():
        y = acc_ref[...] * s_ref[...] + c_ref[...]
        if relu:
            y = jnp.maximum(y, 0.0)
        o_ref[...] = y.astype(o_ref.dtype)


def _mm_res_kernel(a_ref, b_ref, s_ref, c_ref, r_ref, o_ref, acc_ref):
    """Same as _mm_kernel but fuses relu((a@b)*scale + bias + residual)."""
    k = pl.program_id(2)

    @pl.when(k == 0)
    def _():
        acc_ref[...] = jnp.zeros_like(acc_ref)

    acc_ref[...] += jnp.dot(a_ref[...], b_ref[...],
                            preferred_element_type=jnp.float32)

    @pl.when(k == pl.num_programs(2) - 1)
    def _():
        y = (acc_ref[...] * s_ref[...] + c_ref[...]
             + r_ref[...].astype(jnp.float32))
        o_ref[...] = jnp.maximum(y, 0.0).astype(o_ref.dtype)


def _gconv_s1_kernel(x_ref, w_ref, s_ref, c_ref, o_ref, *, taps, mqp):
    """Fused stride-1 3x3 grouped conv for one (batch, 128-out-channel) tile.

    x_ref: (1, Sp, 128) flattened zero-padded input rows for this tile's input
           channels; each tap is a contiguous row-window at a static offset.
    w_ref: (1, 9, 128, 128) tap-major block-diagonal weights.
    o_ref: (1, mqp, 128) output rows in padded-width layout.
    """
    scale = s_ref[...]
    bias = c_ref[...]
    for m0 in range(0, mqp, _GCONV_CHUNK):
        msz = min(_GCONV_CHUNK, mqp - m0)
        acc = jnp.zeros((msz, 128), jnp.float32)
        for t, off in enumerate(taps):
            acc = acc + jnp.dot(x_ref[0, off + m0:off + m0 + msz, :],
                                w_ref[0, t],
                                preferred_element_type=jnp.float32)
        y = acc * scale + bias
        o_ref[0, m0:m0 + msz, :] = jnp.maximum(y, 0.0).astype(o_ref.dtype)


def _gconv_tap_kernel(a_ref, w_ref, s_ref, c_ref, o_ref, acc_ref):
    """Stride-2 grouped conv: one tap (grid axis 2) accumulated per step."""
    t = pl.program_id(2)

    @pl.when(t == 0)
    def _():
        acc_ref[...] = jnp.zeros_like(acc_ref)

    acc_ref[...] += jnp.dot(a_ref[0], w_ref[0, 0],
                            preferred_element_type=jnp.float32)

    @pl.when(t == pl.num_programs(2) - 1)
    def _():
        y = acc_ref[...] * s_ref[...] + c_ref[...]
        o_ref[...] = jnp.maximum(y, 0.0).astype(o_ref.dtype)


def _fc_pool_kernel(x_ref, w_ref, b_ref, o_ref, acc_ref):
    """Global 7x7 avg-pool folded into the final Linear layer."""
    k = pl.program_id(1)

    @pl.when(k == 0)
    def _():
        acc_ref[...] = jnp.zeros_like(acc_ref)

    pooled = jnp.mean(x_ref[...].astype(jnp.float32), axis=1).astype(BF16)
    acc_ref[...] += jnp.dot(pooled, w_ref[...],
                            preferred_element_type=jnp.float32)

    @pl.when(k == pl.num_programs(1) - 1)
    def _():
        o_ref[...] = (acc_ref[...] + b_ref[...]).astype(o_ref.dtype)


# ----------------------------------------------------------------------------
# Pallas-call wrappers
# ----------------------------------------------------------------------------

def _matmul_fused(a, w_p, s_p, b_p, *, relu, residual=None,
                  out_dtype=BF16, n_true=None):
    """a:[M,K] -> act((a @ w_p) * scale + bias [+ residual])[:M, :n_true]."""
    M, K = a.shape
    Kp, Np = w_p.shape
    n_true = Np if n_true is None else n_true
    a = a.astype(BF16)
    if K < Kp:                       # safety net; packers match K exactly
        a = jnp.pad(a, ((0, 0), (0, Kp - K)))
    tm, Mp = _pick_tm(M)
    if Mp > M:
        a = jnp.pad(a, ((0, Mp - M), (0, 0)))
    tk = min(_TK_CAP, Kp)
    tn = min(_TN_CAP, Np)
    gi, gj, gk = Mp // tm, Np // tn, Kp // tk
    s2 = s_p.reshape(1, Np).astype(F32)
    b2 = b_p.reshape(1, Np).astype(F32)

    in_specs = [
        _maybe_buffered((tm, tk), lambda i, j, k: (i, k), gi * gk),
        pl.BlockSpec((tk, tn), lambda i, j, k: (k, j)),
        pl.BlockSpec((1, tn), lambda i, j, k: (0, j)),
        pl.BlockSpec((1, tn), lambda i, j, k: (0, j)),
    ]
    if residual is None:
        kernel = functools.partial(_mm_kernel, relu=relu)
        args = (a, w_p, s2, b2)
        res_bytes = 0
    else:
        r = residual.astype(BF16)
        rM, rN = r.shape
        if rN < Np:
            r = jnp.pad(r, ((0, 0), (0, Np - rN)))
        if Mp > rM:
            r = jnp.pad(r, ((0, Mp - rM), (0, 0)))
        kernel = _mm_res_kernel
        args = (a, w_p, s2, b2, r)
        in_specs = in_specs + [pl.BlockSpec((tm, tn), lambda i, j, k: (i, j))]
        res_bytes = Mp * Np * 2

    out_bytes = Mp * Np * (2 if out_dtype == BF16 else 4)
    cost = pl.CostEstimate(
        flops=int(2 * Mp * Kp * Np),
        transcendentals=0,
        bytes_accessed=int(Mp * Kp * 2 + Kp * Np * 2 + res_bytes + out_bytes))

    out = pl.pallas_call(
        kernel,
        out_shape=jax.ShapeDtypeStruct((Mp, Np), out_dtype),
        grid_spec=pltpu.PrefetchScalarGridSpec(
            num_scalar_prefetch=0,
            grid=(gi, gj, gk),
            in_specs=in_specs,
            out_specs=pl.BlockSpec((tm, tn), lambda i, j, k: (i, j)),
            scratch_shapes=[pltpu.VMEM((tm, tn), jnp.float32)],
        ),
        compiler_params=pltpu.CompilerParams(
            dimension_semantics=("parallel", "parallel", "arbitrary"),
            vmem_limit_bytes=_VMEM_LIMIT),
        cost_estimate=cost,
    )(*args)
    if Mp > M or Np > n_true:
        out = out[:M, :n_true]
    return out


@functools.partial(
    jax.jit, static_argnames=("ksize", "stride", "padding", "relu", "cout"))
def conv_bn_act(x, w_p, scale_p, bias_p, residual=None, *,
                ksize, stride, padding, relu, cout):
    """Conv2d(bias=False) + folded BN + optional fused residual add + ReLU.
    x: NHWC bf16; w_p: pre-packed (Kp, Np) bf16, rows ordered (kh, kw, cin)."""
    B, H, W, Cin = x.shape
    oh = (H + 2 * padding - ksize) // stride + 1
    ow = (W + 2 * padding - ksize) // stride + 1
    Kp = w_p.shape[0]
    if ksize == 1 and padding == 0:
        a = x[:, ::stride, ::stride, :].reshape(B * oh * ow, Cin)
    else:
        xp = jnp.pad(x, ((0, 0), (padding, padding), (padding, padding), (0, 0)))
        cols = []
        for i in range(ksize):
            for j in range(ksize):
                cols.append(xp[:, i:i + stride * oh:stride,
                               j:j + stride * ow:stride, :])
        k_true = ksize * ksize * Cin
        if Kp > k_true:   # build the patch buffer directly at the padded K width
            cols.append(jnp.zeros((B, oh, ow, Kp - k_true), x.dtype))
        a = jnp.concatenate(cols, axis=3).reshape(B * oh * ow, Kp)
    res = None if residual is None else residual.reshape(B * oh * ow, cout)
    y = _matmul_fused(a, w_p, scale_p, bias_p, relu=relu, residual=res,
                      n_true=cout)
    return y.reshape(B, oh, ow, cout)


@jax.jit
def grouped_conv_s1(x, w_slab, scale, bias):
    """3x3 grouped conv (stride 1, pad 1) + folded BN + ReLU with the im2col
    fused into the kernel (no HBM patch buffer).  The zero-padded input is
    flattened to rows of channels so every tap is a contiguous row-window;
    outputs are written in padded-width layout and sliced once afterwards."""
    B, H, W, D = x.shape
    oh, ow, Wp = H, W, W + 2
    # 1 top / 2 bottom / 1 left / 1 right zero pad; the extra bottom row gives
    # the tap-(2,2) window read headroom after flattening.
    xp = jnp.pad(x.astype(BF16), ((0, 0), (1, 2), (1, 1), (0, 0)))
    Sp = (H + 3) * Wp
    xf = xp.reshape(B, Sp, D)
    mq = oh * Wp
    mqp = _ceil_to(mq, 8)
    nt = D // 128
    taps = tuple(di * Wp + dj for di in range(3) for dj in range(3))
    assert taps[-1] + mqp <= Sp
    kernel = functools.partial(_gconv_s1_kernel, taps=taps, mqp=mqp)
    out = pl.pallas_call(
        kernel,
        out_shape=jax.ShapeDtypeStruct((B, mqp, D), BF16),
        grid_spec=pltpu.PrefetchScalarGridSpec(
            num_scalar_prefetch=0,
            grid=(B, nt),
            in_specs=[
                pl.BlockSpec((1, Sp, 128), lambda b, j: (b, 0, j)),
                pl.BlockSpec((1, 9, 128, 128), lambda b, j: (j, 0, 0, 0)),
                pl.BlockSpec((1, 128), lambda b, j: (0, j)),
                pl.BlockSpec((1, 128), lambda b, j: (0, j)),
            ],
            out_specs=pl.BlockSpec((1, mqp, 128), lambda b, j: (b, 0, j)),
        ),
        compiler_params=pltpu.CompilerParams(
            dimension_semantics=("parallel", "parallel"),
            vmem_limit_bytes=_VMEM_LIMIT),
    )(xf, w_slab,
      scale.astype(F32).reshape(1, D), bias.astype(F32).reshape(1, D))
    return out[:, :mq, :].reshape(B, oh, Wp, D)[:, :, :ow, :]


@jax.jit
def grouped_conv_s2(x, w_slab, scale, bias):
    """3x3 grouped conv (stride 2, pad 1) + folded BN + ReLU via a tap-major
    [9, M, D] patch buffer (contiguous channel runs) and a 9-step
    accumulation grid axis.  Only 3 (small) blocks take this path."""
    B, H, W, D = x.shape
    oh = (H - 1) // 2 + 1
    ow = (W - 1) // 2 + 1
    xp = jnp.pad(x.astype(BF16), ((0, 0), (1, 1), (1, 1), (0, 0)))
    taps = [xp[:, di:di + 2 * oh:2, dj:dj + 2 * ow:2, :]
            for di in range(3) for dj in range(3)]
    M = B * oh * ow
    a = jnp.stack(taps, axis=0).reshape(9, M, D)
    tm, Mp = _pick_tm(M)
    if Mp > M:
        a = jnp.pad(a, ((0, 0), (0, Mp - M), (0, 0)))
    nt = D // 128
    out = pl.pallas_call(
        _gconv_tap_kernel,
        out_shape=jax.ShapeDtypeStruct((Mp, D), BF16),
        grid_spec=pltpu.PrefetchScalarGridSpec(
            num_scalar_prefetch=0,
            grid=(Mp // tm, nt, 9),
            in_specs=[
                pl.BlockSpec((1, tm, 128), lambda i, j, t: (t, i, j)),
                pl.BlockSpec((1, 1, 128, 128), lambda i, j, t: (j, t, 0, 0)),
                pl.BlockSpec((1, 128), lambda i, j, t: (0, j)),
                pl.BlockSpec((1, 128), lambda i, j, t: (0, j)),
            ],
            out_specs=pl.BlockSpec((tm, 128), lambda i, j, t: (i, j)),
            scratch_shapes=[pltpu.VMEM((tm, 128), jnp.float32)],
        ),
        compiler_params=pltpu.CompilerParams(
            dimension_semantics=("parallel", "parallel", "arbitrary"),
            vmem_limit_bytes=_VMEM_LIMIT),
    )(a, w_slab,
      scale.astype(F32).reshape(1, D), bias.astype(F32).reshape(1, D))
    if Mp > M:
        out = out[:M]
    return out.reshape(B, oh, ow, D)


@jax.jit
def maxpool_3x3_s2_p1(x):
    """nn.MaxPool2d(3, stride=2, padding=1) on NHWC.
    TODO(synk): could be a Pallas kernel with strided in-VMEM taps; XLA's
    native reduce_window is already far leaner than the pad+9-slice form."""
    return jax.lax.reduce_window(
        x, jnp.array(-jnp.inf, x.dtype), jax.lax.max,
        window_dimensions=(1, 3, 3, 1), window_strides=(1, 2, 2, 1),
        padding=((0, 0), (1, 1), (1, 1), (0, 0)))


@functools.partial(jax.jit, static_argnames=("num_classes",))
def avgpool_fc(x, w_p, bias_p, *, num_classes):
    """AvgPool2d((7,7),(1,1)) + view + Linear folded into one Pallas kernel."""
    B, H, W, C = x.shape
    x3 = x.reshape(B, H * W, C).astype(BF16)
    Kp, Np = w_p.shape
    tk = min(_TK_CAP, Kp)
    tn = min(_TN_CAP, Np)
    out = pl.pallas_call(
        _fc_pool_kernel,
        out_shape=jax.ShapeDtypeStruct((B, Np), F32),
        grid_spec=pltpu.PrefetchScalarGridSpec(
            num_scalar_prefetch=0,
            grid=(Np // tn, Kp // tk),
            in_specs=[
                pl.BlockSpec((B, H * W, tk), lambda j, k: (0, 0, k)),
                pl.BlockSpec((tk, tn), lambda j, k: (k, j)),
                pl.BlockSpec((1, tn), lambda j, k: (0, j)),
            ],
            out_specs=pl.BlockSpec((B, tn), lambda j, k: (0, j)),
            scratch_shapes=[pltpu.VMEM((B, tn), jnp.float32)],
        ),
        compiler_params=pltpu.CompilerParams(
            dimension_semantics=("parallel", "arbitrary"),
            vmem_limit_bytes=_VMEM_LIMIT),
    )(x3, w_p, bias_p.reshape(1, Np).astype(F32))
    return out[:, :num_classes]


# ----------------------------------------------------------------------------
# Deterministic parameter construction (synthetic weights, PyTorch layouts,
# pre-packed for the Pallas kernels)
# ----------------------------------------------------------------------------

class _KeyGen:
    def __init__(self, seed):
        self._key = jax.random.PRNGKey(seed)
        self._i = 0

    def __call__(self):
        self._i += 1
        return jax.random.fold_in(self._key, self._i)


def _bn_fold(kg, c):
    gamma = 1.0 + 0.1 * jax.random.normal(kg(), (c,), F32)
    beta = 0.1 * jax.random.normal(kg(), (c,), F32)
    mean = 0.1 * jax.random.normal(kg(), (c,), F32)
    var = jnp.abs(1.0 + 0.1 * jax.random.normal(kg(), (c,), F32))
    scale = gamma / jnp.sqrt(var + 1e-5)
    bias = beta - mean * scale
    return scale, bias


def _pack_dense_conv(kg, cout, cin, kh, kw):
    """torch OIHW conv weight -> pre-padded (Kp, Np) bf16 matmul weight,
    rows ordered (kh, kw, cin) to match the im2col patch layout."""
    std = (2.0 / (cin * kh * kw)) ** 0.5
    w = std * jax.random.normal(kg(), (cout, cin, kh, kw), F32)       # OIHW
    w2 = jnp.transpose(w, (2, 3, 1, 0)).reshape(kh * kw * cin, cout)  # HWIO flat
    kp, np_ = _pad_k(kh * kw * cin), _pad_n(cout)
    w2 = jnp.pad(w2, ((0, kp - kh * kw * cin), (0, np_ - cout))).astype(BF16)
    return w2, np_


def _pack_bn(kg, cout, np_):
    scale, bias = _bn_fold(kg, cout)
    return jnp.pad(scale, (0, np_ - cout)), jnp.pad(bias, (0, np_ - cout))


def _rand_grouped_weight(kg, d, groups):
    c = d // groups
    std = (2.0 / (c * 9)) ** 0.5
    return std * jax.random.normal(kg(), (d, c, 3, 3), F32)   # torch grouped layout


def _grouped_slab(w, groups):
    """torch grouped (D, D/g, 3, 3) weight -> tap-major block-diagonal slabs
    [D//128, 9, 128(in), 128(out)] bf16; output tile j owns groups (and hence
    input channels) [j*128, (j+1)*128)."""
    d, c = w.shape[0], w.shape[1]
    nt, gb = d // 128, 128 // c
    wg = w.reshape(groups, c, c, 3, 3)                  # (g, o, i, kh, kw)
    wg = jnp.transpose(wg, (3, 4, 0, 2, 1))             # (kh, kw, g, i, o)
    wg = wg.reshape(9, nt, gb, c, c)                    # (tap, tile, g_in_tile, i, o)
    eye = jnp.eye(gb, dtype=w.dtype)
    slab = jnp.einsum('tnlio,lm->tnlimo', wg, eye)      # zero cross-group
    slab = slab.reshape(9, nt, gb * c, gb * c)          # (tap, tile, 128in, 128out)
    return jnp.transpose(slab, (1, 0, 2, 3)).astype(BF16)


_LAYER_CFG = [  # (num_blocks, bottleneck width D, out_channels, stride)
    (3, 128, 256, 1),
    (4, 256, 512, 2),
    (23, 512, 1024, 2),
    (3, 1024, 2048, 2),
]


def make_params(seed, num_classes):
    kg = _KeyGen(seed)
    params = {}
    sw, snp = _pack_dense_conv(kg, 64, 3, 7, 7)
    ss, sb = _pack_bn(kg, 64, snp)
    params['stem'] = dict(w=sw, scale=ss, bias=sb)

    layers = []
    cin = 64
    for (nblocks, d, cout, stride) in _LAYER_CFG:
        blocks = []
        for bi in range(nblocks):
            blk_stride = stride if bi == 0 else 1
            blk = {}
            rw, rnp = _pack_dense_conv(kg, d, cin, 1, 1)
            rs, rb = _pack_bn(kg, d, rnp)
            blk['reduce'] = dict(w=rw, scale=rs, bias=rb)
            gw = _grouped_slab(_rand_grouped_weight(kg, d, _CARDINALITY),
                               _CARDINALITY)
            gs, gbias = _pack_bn(kg, d, d)
            blk['conv'] = dict(w=gw, scale=gs, bias=gbias)
            ew, enp = _pack_dense_conv(kg, cout, d, 1, 1)
            es, eb = _pack_bn(kg, cout, enp)
            blk['expand'] = dict(w=ew, scale=es, bias=eb)
            if bi == 0 and (cin != cout or blk_stride != 1):
                dw, dnp = _pack_dense_conv(kg, cout, cin, 1, 1)
                dsc, db = _pack_bn(kg, cout, dnp)
                blk['down'] = dict(w=dw, scale=dsc, bias=db)
            else:
                blk['down'] = None
            blocks.append(blk)
            cin = cout
        layers.append(blocks)
    params['layers'] = layers

    fc_std = (1.0 / 2048) ** 0.5
    fw = fc_std * jax.random.normal(kg(), (num_classes, 2048), F32)  # [out, in]
    fb = fc_std * jax.random.normal(kg(), (num_classes,), F32)
    kp, np_fc = _pad_k(2048), _pad_n(num_classes)
    fw_p = jnp.pad(fw.T, ((0, kp - 2048), (0, np_fc - num_classes))).astype(BF16)
    params['fc'] = dict(w=fw_p, bias=jnp.pad(fb, (0, np_fc - num_classes)))
    return params


# ----------------------------------------------------------------------------
# Full forward pass (ResNeXt101_32x4d.forward)
# ----------------------------------------------------------------------------

def resnext101_32x4d_forward(x_nchw, params, num_classes=1000):
    # NCHW f32 input -> NHWC bf16 activations
    x = jnp.transpose(x_nchw, (0, 2, 3, 1)).astype(BF16)

    # stem: Conv7x7/2 + BN + ReLU + MaxPool3x3/2
    p = params['stem']
    x = conv_bn_act(x, p['w'], p['scale'], p['bias'],
                    ksize=7, stride=2, padding=3, relu=True, cout=64)
    x = maxpool_3x3_s2_p1(x)

    # layer1..layer4: ResNeXt bottleneck blocks (cardinality 32, width 4)
    for (nblocks, d, cout, stride), blocks in zip(_LAYER_CFG, params['layers']):
        for bi, blk in enumerate(blocks):
            s = stride if bi == 0 else 1
            identity = x
            p = blk['reduce']
            out = conv_bn_act(x, p['w'], p['scale'], p['bias'],
                              ksize=1, stride=1, padding=0, relu=True, cout=d)
            p = blk['conv']
            if s == 1:
                out = grouped_conv_s1(out, p['w'], p['scale'], p['bias'])
            else:
                out = grouped_conv_s2(out, p['w'], p['scale'], p['bias'])
            if blk['down'] is not None:
                pd = blk['down']
                identity = conv_bn_act(identity, pd['w'], pd['scale'],
                                       pd['bias'], ksize=1, stride=s,
                                       padding=0, relu=False, cout=cout)
            p = blk['expand']
            # residual add + ReLU fused into the expand conv's epilogue
            x = conv_bn_act(out, p['w'], p['scale'], p['bias'],
                            residual=identity,
                            ksize=1, stride=1, padding=0, relu=True, cout=cout)

    # logits: AvgPool2d((7,7),(1,1)) + view + Linear(2048, num_classes)
    return avgpool_fc(x, params['fc']['w'], params['fc']['bias'],
                      num_classes=num_classes)


if __name__ == "__main__":
    num_classes = 1000
    batch = 2
    params = make_params(0, num_classes)

    # --- packing self-check for the fused grouped conv (most fragile piece) --
    kt = jax.random.PRNGKey(42)
    xt = 0.5 * jax.random.normal(kt, (1, 8, 8, 128), F32)
    wt = _rand_grouped_weight(_KeyGen(7), 128, _CARDINALITY)
    st = jnp.ones((128,), F32)
    bt = jnp.zeros((128,), F32)
    got = grouped_conv_s1(xt.astype(BF16), _grouped_slab(wt, _CARDINALITY),
                          st, bt)
    ref = jax.lax.conv_general_dilated(
        xt.astype(BF16).astype(F32), wt, (1, 1), ((1, 1), (1, 1)),
        dimension_numbers=('NHWC', 'OIHW', 'NHWC'),
        feature_group_count=_CARDINALITY)
    ref = jnp.maximum(ref, 0.0)
    err = float(jnp.max(jnp.abs(got.astype(F32) - ref)))
    assert err < 0.1, f"grouped-conv packing mismatch (max abs err {err})"

    # --- full forward ---
    x = jax.random.normal(jax.random.PRNGKey(0), (batch, 3, 224, 224), F32)
    logits = resnext101_32x4d_forward(x, params, num_classes=num_classes)
    logits = jax.block_until_ready(logits)
    assert logits.shape == (batch, num_classes), logits.shape
    assert bool(jnp.all(jnp.isfinite(logits))), "non-finite logits"
    print("KERNEL_OK")
</pallas_src>

<mosaic_0001>
module attributes {stable_mosaic.version = 11 : i64} {
  func.func @_gconv_s1_kernel(%arg0: i32, %arg1: i32, %arg2: memref<1x110x128xbf16, #tpu.memory_space<vmem>>, %arg3: memref<1x9x128x128xbf16, #tpu.memory_space<vmem>>, %arg4: memref<1x128xf32, #tpu.memory_space<vmem>>, %arg5: memref<1x128xf32, #tpu.memory_space<vmem>>, %arg6: memref<1x80x128xbf16, #tpu.memory_space<vmem>>) attributes {dimension_semantics = [#tpu.dimension_semantics<parallel>, #tpu.dimension_semantics<parallel>], iteration_bounds = array<i64: 1, 1>, scalar_prefetch = 0 : i64, scratch_operands = 0 : i64, tpu.core_type = #tpu.core_type<tc>, window_params = [{transform_indices = @transform_0, window_bounds = array<i64: 1, 110, 128>}, {transform_indices = @transform_1, window_bounds = array<i64: 1, 9, 128, 128>}, {transform_indices = @transform_2, window_bounds = array<i64: 1, 128>}, {transform_indices = @transform_3, window_bounds = array<i64: 1, 128>}, {transform_indices = @transform_4, window_bounds = array<i64: 1, 80, 128>}]} {
    %c0 = arith.constant 0 : index
    %c0_0 = arith.constant 0 : index
    %0 = vector.load %arg4[%c0, %c0_0] : memref<1x128xf32, #tpu.memory_space<vmem>>, vector<1x128xf32>
    %c0_1 = arith.constant 0 : index
    %c0_2 = arith.constant 0 : index
    %1 = vector.load %arg5[%c0_1, %c0_2] : memref<1x128xf32, #tpu.memory_space<vmem>>, vector<1x128xf32>
    %cst = arith.constant 0.000000e+00 : f32
    %2 = vector.broadcast %cst : f32 to vector<80x128xf32>
    %c0_3 = arith.constant 0 : index
    %c0_4 = arith.constant 0 : index
    %c0_5 = arith.constant 0 : index
    %3 = vector.load %arg2[%c0_3, %c0_4, %c0_5] : memref<1x110x128xbf16, #tpu.memory_space<vmem>>, vector<1x80x128xbf16>
    %4 = vector.shape_cast %3 : vector<1x80x128xbf16> to vector<80x128xbf16>
    %c0_6 = arith.constant 0 : index
    %c0_7 = arith.constant 0 : index
    %c0_8 = arith.constant 0 : index
    %c0_9 = arith.constant 0 : index
    %5 = vector.load %arg3[%c0_6, %c0_7, %c0_8, %c0_9] : memref<1x9x128x128xbf16, #tpu.memory_space<vmem>>, vector<1x1x128x128xbf16>
    %6 = vector.shape_cast %5 : vector<1x1x128x128xbf16> to vector<128x128xbf16>
    %cst_10 = arith.constant dense<0.000000e+00> : vector<80x128xf32>
    %7 = tpu.matmul %4, %6, %cst_10 {dimension_numbers = #tpu.dot_dimension_numbers<[1], [0], [0], [1], [0, 0, 1, 1], [], []>} : vector<80x128xbf16>, vector<128x128xbf16>, vector<80x128xf32> -> vector<80x128xf32>
    %8 = arith.addf %2, %7 : vector<80x128xf32>
    %c0_11 = arith.constant 0 : index
    %c1 = arith.constant 1 : index
    %c0_12 = arith.constant 0 : index
    %9 = vector.load %arg2[%c0_11, %c1, %c0_12] : memref<1x110x128xbf16, #tpu.memory_space<vmem>>, vector<1x80x128xbf16>
    %10 = vector.shape_cast %9 : vector<1x80x128xbf16> to vector<80x128xbf16>
    %c0_13 = arith.constant 0 : index
    %c1_14 = arith.constant 1 : index
    %c0_15 = arith.constant 0 : index
    %c0_16 = arith.constant 0 : index
    %11 = vector.load %arg3[%c0_13, %c1_14, %c0_15, %c0_16] : memref<1x9x128x128xbf16, #tpu.memory_space<vmem>>, vector<1x1x128x128xbf16>
    %12 = vector.shape_cast %11 : vector<1x1x128x128xbf16> to vector<128x128xbf16>
    %cst_17 = arith.constant dense<0.000000e+00> : vector<80x128xf32>
    %13 = tpu.matmul %10, %12, %cst_17 {dimension_numbers = #tpu.dot_dimension_numbers<[1], [0], [0], [1], [0, 0, 1, 1], [], []>} : vector<80x128xbf16>, vector<128x128xbf16>, vector<80x128xf32> -> vector<80x128xf32>
    %14 = arith.addf %8, %13 : vector<80x128xf32>
    %c0_18 = arith.constant 0 : index
    %c2 = arith.constant 2 : index
    %c0_19 = arith.constant 0 : index
    %15 = vector.load %arg2[%c0_18, %c2, %c0_19] : memref<1x110x128xbf16, #tpu.memory_space<vmem>>, vector<1x80x128xbf16>
    %16 = vector.shape_cast %15 : vector<1x80x128xbf16> to vector<80x128xbf16>
    %c0_20 = arith.constant 0 : index
    %c2_21 = arith.constant 2 : index
    %c0_22 = arith.constant 0 : index
    %c0_23 = arith.constant 0 : index
    %17 = vector.load %arg3[%c0_20, %c2_21, %c0_22, %c0_23] : memref<1x9x128x128xbf16, #tpu.memory_space<vmem>>, vector<1x1x128x128xbf16>
    %18 = vector.shape_cast %17 : vector<1x1x128x128xbf16> to vector<128x128xbf16>
    %cst_24 = arith.constant dense<0.000000e+00> : vector<80x128xf32>
    %19 = tpu.matmul %16, %18, %cst_24 {dimension_numbers = #tpu.dot_dimension_numbers<[1], [0], [0], [1], [0, 0, 1, 1], [], []>} : vector<80x128xbf16>, vector<128x128xbf16>, vector<80x128xf32> -> vector<80x128xf32>
    %20 = arith.addf %14, %19 : vector<80x128xf32>
    %c0_25 = arith.constant 0 : index
    %c10 = arith.constant 10 : index
    %c0_26 = arith.constant 0 : index
    %21 = vector.load %arg2[%c0_25, %c10, %c0_26] : memref<1x110x128xbf16, #tpu.memory_space<vmem>>, vector<1x80x128xbf16>
    %22 = vector.shape_cast %21 : vector<1x80x128xbf16> to vector<80x128xbf16>
    %c0_27 = arith.constant 0 : index
    %c3 = arith.constant 3 : index
    %c0_28 = arith.constant 0 : index
    %c0_29 = arith.constant 0 : index
    %23 = vector.load %arg3[%c0_27, %c3, %c0_28, %c0_29] : memref<1x9x128x128xbf16, #tpu.memory_space<vmem>>, vector<1x1x128x128xbf16>
    %24 = vector.shape_cast %23 : vector<1x1x128x128xbf16> to vector<128x128xbf16>
    %cst_30 = arith.constant dense<0.000000e+00> : vector<80x128xf32>
    %25 = tpu.matmul %22, %24, %cst_30 {dimension_numbers = #tpu.dot_dimension_numbers<[1], [0], [0], [1], [0, 0, 1, 1], [], []>} : vector<80x128xbf16>, vector<128x128xbf16>, vector<80x128xf32> -> vector<80x128xf32>
    %26 = arith.addf %20, %25 : vector<80x128xf32>
    %c0_31 = arith.constant 0 : index
    %c11 = arith.constant 11 : index
    %c0_32 = arith.constant 0 : index
    %27 = vector.load %arg2[%c0_31, %c11, %c0_32] : memref<1x110x128xbf16, #tpu.memory_space<vmem>>, vector<1x80x128xbf16>
    %28 = vector.shape_cast %27 : vector<1x80x128xbf16> to vector<80x128xbf16>
    %c0_33 = arith.constant 0 : index
    %c4 = arith.constant 4 : index
    %c0_34 = arith.constant 0 : index
    %c0_35 = arith.constant 0 : index
    %29 = vector.load %arg3[%c0_33, %c4, %c0_34, %c0_35] : memref<1x9x128x128xbf16, #tpu.memory_space<vmem>>, vector<1x1x128x128xbf16>
    %30 = vector.shape_cast %29 : vector<1x1x128x128xbf16> to vector<128x128xbf16>
    %cst_36 = arith.constant dense<0.000000e+00> : vector<80x128xf32>
    %31 = tpu.matmul %28, %30, %cst_36 {dimension_numbers = #tpu.dot_dimension_numbers<[1], [0], [0], [1], [0, 0, 1, 1], [], []>} : vector<80x128xbf16>, vector<128x128xbf16>, vector<80x128xf32> -> vector<80x128xf32>
    %32 = arith.addf %26, %31 : vector<80x128xf32>
    %c0_37 = arith.constant 0 : index
    %c12 = arith.constant 12 : index
    %c0_38 = arith.constant 0 : index
    %33 = vector.load %arg2[%c0_37, %c12, %c0_38] : memref<1x110x128xbf16, #tpu.memory_space<vmem>>, vector<1x80x128xbf16>
    %34 = vector.shape_cast %33 : vector<1x80x128xbf16> to vector<80x128xbf16>
    %c0_39 = arith.constant 0 : index
    %c5 = arith.constant 5 : index
    %c0_40 = arith.constant 0 : index
    %c0_41 = arith.constant 0 : index
    %35 = vector.load %arg3[%c0_39, %c5, %c0_40, %c0_41] : memref<1x9x128x128xbf16, #tpu.memory_space<vmem>>, vector<1x1x128x128xbf16>
    %36 = vector.shape_cast %35 : vector<1x1x128x128xbf16> to vector<128x128xbf16>
    %cst_42 = arith.constant dense<0.000000e+00> : vector<80x128xf32>
    %37 = tpu.matmul %34, %36, %cst_42 {dimension_numbers = #tpu.dot_dimension_numbers<[1], [0], [0], [1], [0, 0, 1, 1], [], []>} : vector<80x128xbf16>, vector<128x128xbf16>, vector<80x128xf32> -> vector<80x128xf32>
    %38 = arith.addf %32, %37 : vector<80x128xf32>
    %c0_43 = arith.constant 0 : index
    %c20 = arith.constant 20 : index
    %c0_44 = arith.constant 0 : index
    %39 = vector.load %arg2[%c0_43, %c20, %c0_44] : memref<1x110x128xbf16, #tpu.memory_space<vmem>>, vector<1x80x128xbf16>
    %40 = vector.shape_cast %39 : vector<1x80x128xbf16> to vector<80x128xbf16>
    %c0_45 = arith.constant 0 : index
    %c6 = arith.constant 6 : index
    %c0_46 = arith.constant 0 : index
    %c0_47 = arith.constant 0 : index
    %41 = vector.load %arg3[%c0_45, %c6, %c0_46, %c0_47] : memref<1x9x128x128xbf16, #tpu.memory_space<vmem>>, vector<1x1x128x128xbf16>
    %42 = vector.shape_cast %41 : vector<1x1x128x128xbf16> to vector<128x128xbf16>
    %cst_48 = arith.constant dense<0.000000e+00> : vector<80x128xf32>
    %43 = tpu.matmul %40, %42, %cst_48 {dimension_numbers = #tpu.dot_dimension_numbers<[1], [0], [0], [1], [0, 0, 1, 1], [], []>} : vector<80x128xbf16>, vector<128x128xbf16>, vector<80x128xf32> -> vector<80x128xf32>
    %44 = arith.addf %38, %43 : vector<80x128xf32>
    %c0_49 = arith.constant 0 : index
    %c21 = arith.constant 21 : index
    %c0_50 = arith.constant 0 : index
    %45 = vector.load %arg2[%c0_49, %c21, %c0_50] : memref<1x110x128xbf16, #tpu.memory_space<vmem>>, vector<1x80x128xbf16>
    %46 = vector.shape_cast %45 : vector<1x80x128xbf16> to vector<80x128xbf16>
    %c0_51 = arith.constant 0 : index
    %c7 = arith.constant 7 : index
    %c0_52 = arith.constant 0 : index
    %c0_53 = arith.constant 0 : index
    %47 = vector.load %arg3[%c0_51, %c7, %c0_52, %c0_53] : memref<1x9x128x128xbf16, #tpu.memory_space<vmem>>, vector<1x1x128x128xbf16>
    %48 = vector.shape_cast %47 : vector<1x1x128x128xbf16> to vector<128x128xbf16>
    %cst_54 = arith.constant dense<0.000000e+00> : vector<80x128xf32>
    %49 = tpu.matmul %46, %48, %cst_54 {dimension_numbers = #tpu.dot_dimension_numbers<[1], [0], [0], [1], [0, 0, 1, 1], [], []>} : vector<80x128xbf16>, vector<128x128xbf16>, vector<80x128xf32> -> vector<80x128xf32>
    %50 = arith.addf %44, %49 : vector<80x128xf32>
    %c0_55 = arith.constant 0 : index
    %c22 = arith.constant 22 : index
    %c0_56 = arith.constant 0 : index
    %51 = vector.load %arg2[%c0_55, %c22, %c0_56] : memref<1x110x128xbf16, #tpu.memory_space<vmem>>, vector<1x80x128xbf16>
    %52 = vector.shape_cast %51 : vector<1x80x128xbf16> to vector<80x128xbf16>
    %c0_57 = arith.constant 0 : index
    %c8 = arith.constant 8 : index
    %c0_58 = arith.constant 0 : index
    %c0_59 = arith.constant 0 : index
    %53 = vector.load %arg3[%c0_57, %c8, %c0_58, %c0_59] : memref<1x9x128x128xbf16, #tpu.memory_space<vmem>>, vector<1x1x128x128xbf16>
    %54 = vector.shape_cast %53 : vector<1x1x128x128xbf16> to vector<128x128xbf16>
    %cst_60 = arith.constant dense<0.000000e+00> : vector<80x128xf32>
    %55 = tpu.matmul %52, %54, %cst_60 {dimension_numbers = #tpu.dot_dimension_numbers<[1], [0], [0], [1], [0, 0, 1, 1], [], []>} : vector<80x128xbf16>, vector<128x128xbf16>, vector<80x128xf32> -> vector<80x128xf32>
    %56 = arith.addf %50, %55 : vector<80x128xf32>
    %57 = vector.broadcast %0 : vector<1x128xf32> to vector<80x128xf32>
    %58 = arith.mulf %56, %57 : vector<80x128xf32>
    %59 = vector.broadcast %1 : vector<1x128xf32> to vector<80x128xf32>
    %60 = arith.addf %58, %59 : vector<80x128xf32>
    %cst_61 = arith.constant 0.000000e+00 : f32
    %61 = vector.broadcast %cst_61 : f32 to vector<80x128xf32>
    %62 = arith.maximumf %60, %61 : vector<80x128xf32>
    %63 = arith.truncf %62 : vector<80x128xf32> to vector<80x128xbf16>
    %c0_62 = arith.constant 0 : index
    %c0_63 = arith.constant 0 : index
    %c0_64 = arith.constant 0 : index
    %64 = vector.load %arg6[%c0_62, %c0_63, %c0_64] : memref<1x80x128xbf16, #tpu.memory_space<vmem>>, vector<1x80x128xbf16>
    %65 = vector.shape_cast %64 : vector<1x80x128xbf16> to vector<80x128xbf16>
    %66 = vector.shape_cast %63 : vector<80x128xbf16> to vector<1x80x128xbf16>
    tpu.vector_store %arg6[%c0_62, %c0_63, %c0_64], %66 {strides = array<i32>} : memref<1x80x128xbf16, #tpu.memory_space<vmem>>, vector<1x80x128xbf16>,
    return
  }
  func.func @transform_0(%arg0: i32, %arg1: i32) -> (i32, i32, i32) {
    %c0_i32 = arith.constant 0 : i32
    %c0_i32_0 = arith.constant 0 : i32
    return %arg0, %c0_i32, %arg1 : i32, i32, i32
  }
  func.func @transform_1(%arg0: i32, %arg1: i32) -> (i32, i32, i32, i32) {
    %c0_i32 = arith.constant 0 : i32
    %c0_i32_0 = arith.constant 0 : i32
    %c0_i32_1 = arith.constant 0 : i32
    %c0_i32_2 = arith.constant 0 : i32
    return %arg1, %c0_i32, %c0_i32_0, %c0_i32_1 : i32, i32, i32, i32
  }
  func.func @transform_2(%arg0: i32, %arg1: i32) -> (i32, i32) {
    %c0_i32 = arith.constant 0 : i32
    %c0_i32_0 = arith.constant 0 : i32
    return %c0_i32, %arg1 : i32, i32
  }
  func.func @transform_3(%arg0: i32, %arg1: i32) -> (i32, i32) {
    %c0_i32 = arith.constant 0 : i32
    %c0_i32_0 = arith.constant 0 : i32
    return %c0_i32, %arg1 : i32, i32
  }
  func.func @transform_4(%arg0: i32, %arg1: i32) -> (i32, i32, i32) {
    %c0_i32 = arith.constant 0 : i32
    %c0_i32_0 = arith.constant 0 : i32
    return %arg0, %c0_i32, %arg1 : i32, i32, i32
  }
}

</mosaic_0001>

<llo_original>
// kernel: grouped_conv_s1.1
$region0: #{grouped_conv_s1.1}
  #allocation0 [shape = 'u32[]', space=smem, size = 0x4, offset = 0x4, fixed_abs, tag = 'smem constant byte address 0x4 - core index']
  #allocation1 [shape = 'u32[144,128]{1,0:T(1,128)}', space=vmem, size = 0x12000, scoped, tag = 'internal scratch']
  %s0 = inlined_call_operand.vmem [shape: bf16[1,110,128], index: 0, kind: input, shape index: {}]
  %s1 = inlined_call_operand.hbm [shape: bf16[1,9,128,128], index: 1, kind: input, shape index: {}]
  %s2 = inlined_call_operand.vmem [shape: f32[1,128], index: 2, kind: input, shape index: {}]
  %s3 = inlined_call_operand.vmem [shape: f32[1,128], index: 3, kind: input, shape index: {}]
  %s4 = inlined_call_operand.vmem [shape: bf16[1,80,128], index: 4, kind: output, shape index: {}]
  %s5 = sld [smem:[#allocation0]]
  $region30: #{grouped_conv_s1.1} parent=0
    _
  %s7 = ssub.s32 1, %s5
  %s8 = scalar_select 0, %s7, %s5
  $region1: #{grouped_conv_s1.1} parent=0
    #allocation2 [shape = 'u8[294912]{0}', space=vmem, size = 0x48000, scoped, tag = 'input window, operand 1, single buffered']
    #allocation3 [shape = 's32[1]{0}', space=sflag, size = 0x4, scoped, tag = 'scoped memory for grouped_conv_s1.1']
    %9 = vsyncpa [#allocation3], 0
    // Predicated region
    $region2: #{grouped_conv_s1.1} parent=1 // pred_check
      _
    $region3: #{grouped_conv_s1.1} parent=1 // pred_check_branch
      %11 = sbr.rel (0) target = $region5
    $region4: #{grouped_conv_s1.1} parent=1 // pred_region
      _
    $region5: #{grouped_conv_s1.1} parent=1 // pred_fallthru
      _
    // Predicated region
    $region6: #{grouped_conv_s1.1} parent=1 // pred_check
      _
    $region7: #{grouped_conv_s1.1} parent=1 // pred_check_branch
      %13 = sbr.rel (0) target = $region9
    $region8: #{grouped_conv_s1.1} parent=1 // pred_region
      %s15 = ssub.s32 9216, 9216
      %16 = vsyncadd [#allocation3], %s15
      %s17 = sshll.u32 [#allocation2], 4
      %s18 = int_to_ptr.vmem [resolvable:$true] %s17
      %23 = dma.hbm_to_vmem [thread:$0]  %s1, 9216, %s18, [#allocation3], 64, 64, 4
    $region9: #{grouped_conv_s1.1} parent=1 // pred_fallthru
      _
    // Predicated region
    $region10: #{grouped_conv_s1.1} parent=1 // pred_check
      _
    $region11: #{grouped_conv_s1.1} parent=1 // pred_check_branch
      %25 = sbr.rel (0) target = $region13
    $region12: #{grouped_conv_s1.1} parent=1 // pred_region
      _
    $region13: #{grouped_conv_s1.1} parent=1 // pred_fallthru
      _
    // Predicated region
    $region14: #{grouped_conv_s1.1} parent=1 // pred_check
      _
    $region15: #{grouped_conv_s1.1} parent=1 // pred_check_branch
      %27 = sbr.rel (0) target = $region17
    $region16: #{grouped_conv_s1.1} parent=1 // pred_region
      _
    $region17: #{grouped_conv_s1.1} parent=1 // pred_fallthru
      _
    // Predicated region
    $region18: #{grouped_conv_s1.1} parent=1 // pred_check
      _
    $region19: #{grouped_conv_s1.1} parent=1 // pred_check_branch
      %29 = sbr.rel (0) target = $region21
    $region20: #{grouped_conv_s1.1} parent=1 // pred_region
      %30 = dma.done [#allocation3], 9216
    $region21: #{grouped_conv_s1.1} parent=1 // pred_fallthru
      _
    %v32 = vld [vmem:[%s2] sm:$0x1]
    %v33 = vld [vmem:[%s3] sm:$0x1]
    %v34 = vld [vmem:[%s0] sm:$0xf]
    %v35 = vld [vmem:[%s0 + $0x4] sm:$0xf]
    %v36 = vld [vmem:[%s0 + $0x8] sm:$0xf]
    %v37 = vld [vmem:[%s0 + $0xc] sm:$0xf]
    %v38 = vld [vmem:[%s0 + $0x10] sm:$0xf]
    %v39 = vld [vmem:[%s0 + $0x14] sm:$0xf]
    %v40 = vld [vmem:[%s0 + $0x18] sm:$0xf]
    %v41 = vld [vmem:[%s0 + $0x1c] sm:$0xf]
    %v42 = vld [vmem:[%s0 + $0x20] sm:$0xf]
    %v43 = vld [vmem:[%s0 + $0x24] sm:$0xf]
    %v44 = vld [vmem:[#allocation2] sm:$0xf]
    %v45 = vld [vmem:[#allocation2 + $0x4] sm:$0xf]
    %v46 = vld [vmem:[#allocation2 + $0x8] sm:$0xf]
    %v47 = vld [vmem:[#allocation2 + $0xc] sm:$0xf]
    %v48 = vld [vmem:[#allocation2 + $0x10] sm:$0xf]
    %v49 = vld [vmem:[#allocation2 + $0x14] sm:$0xf]
    %v50 = vld [vmem:[#allocation2 + $0x18] sm:$0xf]
    %v51 = vld [vmem:[#allocation2 + $0x1c] sm:$0xf]
    %v52 = vld [vmem:[#allocation2 + $0x20] sm:$0xf]
    %v53 = vld [vmem:[#allocation2 + $0x24] sm:$0xf]
    %v54 = vld [vmem:[#allocation2 + $0x28] sm:$0xf]
    %v55 = vld [vmem:[#allocation2 + $0x2c] sm:$0xf]
    %v56 = vld [vmem:[#allocation2 + $0x30] sm:$0xf]
    %v57 = vld [vmem:[#allocation2 + $0x34] sm:$0xf]
    %v58 = vld [vmem:[#allocation2 + $0x38] sm:$0xf]
    %v59 = vld [vmem:[#allocation2 + $0x3c] sm:$0xf]
    %v60 = vld [vmem:[%s0 + $0x28] sm:$0x1]
    %s61 = scalar_lea.vmem [#allocation2], 64
    %v62 = vld [vmem:[%s61] sm:$0xf]
    %v63 = vld [vmem:[%s61 + $0x4] sm:$0xf]
    %v64 = vld [vmem:[%s61 + $0x8] sm:$0xf]
    %v65 = vld [vmem:[%s61 + $0xc] sm:$0xf]
    %v66 = vld [vmem:[%s61 + $0x10] sm:$0xf]
    %v67 = vld [vmem:[%s61 + $0x14] sm:$0xf]
    %v68 = vld [vmem:[%s61 + $0x18] sm:$0xf]
    %v69 = vld [vmem:[%s61 + $0x1c] sm:$0xf]
    %v70 = vld [vmem:[%s61 + $0x20] sm:$0xf]
    %v71 = vld [vmem:[%s61 + $0x24] sm:$0xf]
    %v72 = vld [vmem:[%s61 + $0x28] sm:$0xf]
    %v73 = vld [vmem:[%s61 + $0x2c] sm:$0xf]
    %v74 = vld [vmem:[%s61 + $0x30] sm:$0xf]
    %v75 = vld [vmem:[%s61 + $0x34] sm:$0xf]
    %v76 = vld [vmem:[%s61 + $0x38] sm:$0xf]
    %v77 = vld [vmem:[%s61 + $0x3c] sm:$0xf]
    %v89 = vunpack.c.l.b16 %v34
    %v90 = vunpack.c.l.b16 %v35
    %v91 = vunpack.c.l.b16 %v36
    %v92 = vunpack.c.l.b16 %v37
    %v93 = vunpack.c.l.b16 %v38
    %v94 = vunpack.c.l.b16 %v39
    %v95 = vunpack.c.l.b16 %v40
    %v96 = vunpack.c.l.b16 %v41
    %v97 = vunpack.c.l.b16 %v42
    %v98 = vunpack.c.l.b16 %v43
    %v99 = vunpack.c.l.b16 %v60
    %v100 = vpack.c.b16 %v90, %v89
    %v101 = vpack.c.b16 %v92, %v91
    %v102 = vpack.c.b16 %v94, %v93
    %v103 = vpack.c.b16 %v96, %v95
    %v104 = vpack.c.b16 %v98, %v97
    %v105 = vpack.c.b16 %v99, %v99
    %vm106 = vsmask.f32 7424
    %v108 = vshrl.u32 %v100, 16
    %v110 = vshll.u32 %v100, 16
    %v112 = vrot.slane %v110, 1
    %v113 = vor.u32 %v108, %v112
    %v115 = vshll.u32 %v101, 16
    %v117 = vrot.slane %v115, 1
    %v118 = vsel %vm106, %v113, %v117
    %v119 = vshrl.u32 %v101, 16
    %v121 = vor.u32 %v119, %v117
    %v123 = vshll.u32 %v102, 16
    %v125 = vrot.slane %v123, 1
    %v126 = vsel %vm106, %v121, %v125
    %v127 = vshrl.u32 %v102, 16
    %v129 = vor.u32 %v127, %v125
    %v131 = vshll.u32 %v103, 16
    %v133 = vrot.slane %v131, 1
    %v134 = vsel %vm106, %v129, %v133
    %v135 = vshrl.u32 %v103, 16
    %v137 = vor.u32 %v135, %v133
    %v139 = vshll.u32 %v104, 16
    %v141 = vrot.slane %v139, 1
    %v142 = vsel %vm106, %v137, %v141
    %v143 = vshrl.u32 %v104, 16
    %v145 = vor.u32 %v143, %v141
    %v147 = vshll.u32 %v105, 16
    %v149 = vrot.slane %v147, 1
    %v150 = vsel %vm106, %v145, %v149
    %v172 = vunpack.c.l.b16 %v62
    %v173 = vunpack.c.l.b16 %v63
    %v174 = vunpack.c.l.b16 %v64
    %v175 = vunpack.c.l.b16 %v65
    %v176 = vunpack.c.l.b16 %v66
    %v177 = vunpack.c.l.b16 %v67
    %v178 = vunpack.c.l.b16 %v68
    %v179 = vunpack.c.l.b16 %v69
    %v180 = vunpack.c.l.b16 %v70
    %v181 = vunpack.c.l.b16 %v71
    %v182 = vunpack.c.l.b16 %v72
    %v183 = vunpack.c.l.b16 %v73
    %v184 = vunpack.c.l.b16 %v74
    %v185 = vunpack.c.l.b16 %v75
    %v186 = vunpack.c.l.b16 %v76
    %v187 = vunpack.c.l.b16 %v77
    %v188 = vpack.c.b16 %v173, %v172
    %v189 = vpack.c.b16 %v175, %v174
    %v190 = vpack.c.b16 %v177, %v176
    %v191 = vpack.c.b16 %v179, %v178
    %v192 = vpack.c.b16 %v181, %v180
    %v193 = vpack.c.b16 %v183, %v182
    %v194 = vpack.c.b16 %v185, %v184
    %v195 = vpack.c.b16 %v187, %v186
    %204 = vmatprep.subr.bf16.mxu0 0
    %205 = vmatpush1.bf16.msra.mxu0 %v188
    %206 = vmatprep.subr.bf16.mxu0 0
    %207 = vmatpush1.bf16.msra.mxu0 %v189
    %208 = vmatprep.subr.bf16.mxu0 0
    %209 = vmatpush1.bf16.msra.mxu0 %v190
    %210 = vmatprep.subr.bf16.mxu0 0
    %211 = vmatpush1.bf16.msra.mxu0 %v191
    %212 = vmatprep.subr.bf16.mxu0 0
    %213 = vmatpush1.bf16.msra.mxu0 %v192
    %214 = vmatprep.subr.bf16.mxu0 0
    %215 = vmatpush1.bf16.msra.mxu0 %v193
    %216 = vmatprep.subr.bf16.mxu0 0
    %217 = vmatpush1.bf16.msra.mxu0 %v194
    %218 = vmatprep.subr.bf16.mxu0 0
    %219 = vmatpush1.bf16.msra.mxu0 %v195
    %220 = vmatprep.subr.bf16.mxu0 0
    %221 = vmatpush1.bf16.msra.mxu0 0
    %222 = vmatprep.subr.bf16.mxu0 0
    %223 = vmatpush1.bf16.msra.mxu0 0
    %224 = vmatprep.subr.bf16.mxu0 0
    %225 = vmatpush1.bf16.msra.mxu0 0
    %226 = vmatprep.subr.bf16.mxu0 0
    %227 = vmatpush1.bf16.msra.mxu0 0
    %228 = vmatprep.subr.bf16.mxu0 0
    %229 = vmatpush1.bf16.msra.mxu0 0
    %230 = vmatprep.subr.bf16.mxu0 0
    %231 = vmatpush1.bf16.msra.mxu0 0
    %232 = vmatprep.subr.bf16.mxu0 0
    %233 = vmatpush1.bf16.msra.mxu0 0
    %234 = vmatprep.subr.bf16.mxu0 0
    %235 = vmatpush1.bf16.msra.mxu0 0
    %236 = vmatprep.mubr.bf16.mxu0 0
    %237 = vmatmul.mubr.bf16.gmra.mrb[0].mxu0 %v118
    %v238 = vpop.f32.mrb[0].mxu0
    %v239 = vadd.f32 0.0, %v238
    %v240 = vpop.f32.mrb[0].mxu0
    %v241 = vpop.f32.mrb[0].mxu0
    %v242 = vadd.f32 0.0, %v241
    %v243 = vpop.f32.mrb[0].mxu0
    %244 = vmatprep.mubr.bf16.mxu0 0
    %245 = vmatmul.mubr.bf16.gmra.mrb[0].mxu0 %v126
    %v246 = vpop.f32.mrb[0].mxu0
    %v247 = vadd.f32 0.0, %v246
    %v248 = vpop.f32.mrb[0].mxu0
    %v249 = vpop.f32.mrb[0].mxu0
    %v250 = vadd.f32 0.0, %v249
    %v251 = vpop.f32.mrb[0].mxu0
    %252 = vmatprep.mubr.bf16.mxu0 0
    %253 = vmatmul.mubr.bf16.gmra.mrb[0].mxu0 %v134
    %v254 = vpop.f32.mrb[0].mxu0
    %v255 = vadd.f32 0.0, %v254
    %v256 = vpop.f32.mrb[0].mxu0
    %v257 = vpop.f32.mrb[0].mxu0
    %v258 = vadd.f32 0.0, %v257
    %v259 = vpop.f32.mrb[0].mxu0
    %260 = vmatprep.mubr.bf16.mxu0 0
    %261 = vmatmul.mubr.bf16.gmra.mrb[0].mxu0 %v142
    %v262 = vpop.f32.mrb[0].mxu0
    %v263 = vadd.f32 0.0, %v262
    %v264 = vpop.f32.mrb[0].mxu0
    %v265 = vpop.f32.mrb[0].mxu0
    %v266 = vadd.f32 0.0, %v265
    %v267 = vpop.f32.mrb[0].mxu0
    %268 = vmatprep.mubr.bf16.mxu0 0
    %269 = vmatmul.mubr.bf16.gmra.mrb[0].mxu0 %v150
    %v270 = vpop.f32.mrb[0].mxu0
    %v271 = vadd.f32 0.0, %v270
    %v272 = vpop.f32.mrb[0].mxu0
    %v273 = vpop.f32.mrb[0].mxu0
    %v274 = vadd.f32 0.0, %v273
    %v275 = vpop.f32.mrb[0].mxu0
    %276 = vdwg.mxu0
    %v298 = vunpack.c.l.b16 %v44
    %v299 = vunpack.c.l.b16 %v45
    %v300 = vunpack.c.l.b16 %v46
    %v301 = vunpack.c.l.b16 %v47
    %v302 = vunpack.c.l.b16 %v48
    %v303 = vunpack.c.l.b16 %v49
    %v304 = vunpack.c.l.b16 %v50
    %v305 = vunpack.c.l.b16 %v51
    %v306 = vunpack.c.l.b16 %v52
    %v307 = vunpack.c.l.b16 %v53
    %v308 = vunpack.c.l.b16 %v54
    %v309 = vunpack.c.l.b16 %v55
    %v310 = vunpack.c.l.b16 %v56
    %v311 = vunpack.c.l.b16 %v57
    %v312 = vunpack.c.l.b16 %v58
    %v313 = vunpack.c.l.b16 %v59
    %v314 = vpack.c.b16 %v299, %v298
    %v315 = vpack.c.b16 %v301, %v300
    %v316 = vpack.c.b16 %v303, %v302
    %v317 = vpack.c.b16 %v305, %v304
    %v318 = vpack.c.b16 %v307, %v306
    %v319 = vpack.c.b16 %v309, %v308
    %v320 = vpack.c.b16 %v311, %v310
    %v321 = vpack.c.b16 %v313, %v312
    %330 = vmatprep.subr.bf16.mxu0 0
    %331 = vmatpush1.bf16.msra.mxu0 %v314
    %332 = vmatprep.subr.bf16.mxu0 0
    %333 = vmatpush1.bf16.msra.mxu0 %v315
    %334 = vmatprep.subr.bf16.mxu0 0
    %335 = vmatpush1.bf16.msra.mxu0 %v316
    %336 = vmatprep.subr.bf16.mxu0 0
    %337 = vmatpush1.bf16.msra.mxu0 %v317
    %338 = vmatprep.subr.bf16.mxu0 0
    %339 = vmatpush1.bf16.msra.mxu0 %v318
    %340 = vmatprep.subr.bf16.mxu0 0
    %341 = vmatpush1.bf16.msra.mxu0 %v319
    %342 = vmatprep.subr.bf16.mxu0 0
    %343 = vmatpush1.bf16.msra.mxu0 %v320
    %344 = vmatprep.subr.bf16.mxu0 0
    %345 = vmatpush1.bf16.msra.mxu0 %v321
    %346 = vmatprep.subr.bf16.mxu0 0
    %347 = vmatpush1.bf16.msra.mxu0 0
    %348 = vmatprep.subr.bf16.mxu0 0
    %349 = vmatpush1.bf16.msra.mxu0 0
    %350 = vmatprep.subr.bf16.mxu0 0
    %351 = vmatpush1.bf16.msra.mxu0 0
    %352 = vmatprep.subr.bf16.mxu0 0
    %353 = vmatpush1.bf16.msra.mxu0 0
    %354 = vmatprep.subr.bf16.mxu0 0
    %355 = vmatpush1.bf16.msra.mxu0 0
    %356 = vmatprep.subr.bf16.mxu0 0
    %357 = vmatpush1.bf16.msra.mxu0 0
    %358 = vmatprep.subr.bf16.mxu0 0
    %359 = vmatpush1.bf16.msra.mxu0 0
    %360 = vmatprep.subr.bf16.mxu0 0
    %361 = vmatpush1.bf16.msra.mxu0 0
    %362 = vmatprep.mubr.bf16.mxu0 0
    %363 = vmatmul.mubr.bf16.gmra.mrb[0].mxu0 %v100
    %v364 = vpop.f32.mrb[0].mxu0
    %v365 = vadd.f32 %v239, %v364
    %v366 = vpop.f32.mrb[0].mxu0
    %v367 = vpop.f32.mrb[0].mxu0
    %v368 = vadd.f32 %v242, %v367
    %v369 = vpop.f32.mrb[0].mxu0
    %370 = vmatprep.mubr.bf16.mxu0 0
    %371 = vmatmul.mubr.bf16.gmra.mrb[0].mxu0 %v101
    %v372 = vpop.f32.mrb[0].mxu0
    %v373 = vadd.f32 %v247, %v372
    %v374 = vpop.f32.mrb[0].mxu0
    %v375 = vpop.f32.mrb[0].mxu0
    %v376 = vadd.f32 %v250, %v375
    %v377 = vpop.f32.mrb[0].mxu0
    %378 = vmatprep.mubr.bf16.mxu0 0
    %379 = vmatmul.mubr.bf16.gmra.mrb[0].mxu0 %v102
    %v380 = vpop.f32.mrb[0].mxu0
    %v381 = vadd.f32 %v255, %v380
    %v382 = vpop.f32.mrb[0].mxu0
    %v383 = vpop.f32.mrb[0].mxu0
    %v384 = vadd.f32 %v258, %v383
    %v385 = vpop.f32.mrb[0].mxu0
    %386 = vmatprep.mubr.bf16.mxu0 0
    %387 = vmatmul.mubr.bf16.gmra.mrb[0].mxu0 %v103
    %v388 = vpop.f32.mrb[0].mxu0
    %v389 = vadd.f32 %v263, %v388
    %v390 = vpop.f32.mrb[0].mxu0
    %v391 = vpop.f32.mrb[0].mxu0
    %v392 = vadd.f32 %v266, %v391
    %v393 = vpop.f32.mrb[0].mxu0
    %394 = vmatprep.mubr.bf16.mxu0 0
    %395 = vmatmul.mubr.bf16.gmra.mrb[0].mxu0 %v104
    %v396 = vpop.f32.mrb[0].mxu0
    %v397 = vadd.f32 %v271, %v396
    %v398 = vpop.f32.mrb[0].mxu0
    %v399 = vpop.f32.mrb[0].mxu0
    %v400 = vadd.f32 %v274, %v399
    %v401 = vpop.f32.mrb[0].mxu0
    %402 = vdwg.mxu0
    %v403 = vld [vmem:[%s0] sm:$0xe]
    %s404 = scalar_lea.vmem [#allocation2], 128
    %v405 = vld [vmem:[%s404] sm:$0xf]
    %v406 = vld [vmem:[%s404 + $0x4] sm:$0xf]
    %v407 = vld [vmem:[%s404 + $0x8] sm:$0xf]
    %v408 = vld [vmem:[%s404 + $0xc] sm:$0xf]
    %v409 = vld [vmem:[%s404 + $0x10] sm:$0xf]
    %v410 = vld [vmem:[%s404 + $0x14] sm:$0xf]
    %v411 = vld [vmem:[%s404 + $0x18] sm:$0xf]
    %v412 = vld [vmem:[%s404 + $0x1c] sm:$0xf]
    %v413 = vld [vmem:[%s404 + $0x20] sm:$0xf]
    %v414 = vld [vmem:[%s404 + $0x24] sm:$0xf]
    %v415 = vld [vmem:[%s404 + $0x28] sm:$0xf]
    %v416 = vld [vmem:[%s404 + $0x2c] sm:$0xf]
    %v417 = vld [vmem:[%s404 + $0x30] sm:$0xf]
    %v418 = vld [vmem:[%s404 + $0x34] sm:$0xf]
    %v419 = vld [vmem:[%s404 + $0x38] sm:$0xf]
    %v420 = vld [vmem:[%s404 + $0x3c] sm:$0xf]
    %v422 = vunpack.c.l.b16 %v403
    %v423 = vpack.c.b16 %v90, %v422
    %vm424 = vcmask 1046528
    %v425 = vrot.slane %v423, 1
    %v426 = vrot.slane %v101, 1
    %v427 = vsel %vm424, %v425, %v426
    %v428 = vrot.slane %v102, 1
    %v429 = vsel %vm424, %v426, %v428
    %v430 = vrot.slane %v103, 1
    %v431 = vsel %vm424, %v428, %v430
    %v432 = vrot.slane %v104, 1
    %v433 = vsel %vm424, %v430, %v432
    %v434 = vrot.slane %v105, 1
    %v435 = vsel %vm424, %v432, %v434
    %v457 = vunpack.c.l.b16 %v405
    %v458 = vunpack.c.l.b16 %v406
    %v459 = vunpack.c.l.b16 %v407
    %v460 = vunpack.c.l.b16 %v408
    %v461 = vunpack.c.l.b16 %v409
    %v462 = vunpack.c.l.b16 %v410
    %v463 = vunpack.c.l.b16 %v411
    %v464 = vunpack.c.l.b16 %v412
    %v465 = vunpack.c.l.b16 %v413
    %v466 = vunpack.c.l.b16 %v414
    %v467 = vunpack.c.l.b16 %v415
    %v468 = vunpack.c.l.b16 %v416
    %v469 = vunpack.c.l.b16 %v417
    %v470 = vunpack.c.l.b16 %v418
    %v471 = vunpack.c.l.b16 %v419
    %v472 = vunpack.c.l.b16 %v420
    %v473 = vpack.c.b16 %v458, %v457
    %v474 = vpack.c.b16 %v460, %v459
    %v475 = vpack.c.b16 %v462, %v461
    %v476 = vpack.c.b16 %v464, %v463
    %v477 = vpack.c.b16 %v466, %v465
    %v478 = vpack.c.b16 %v468, %v467
    %v479 = vpack.c.b16 %v470, %v469
    %v480 = vpack.c.b16 %v472, %v471
    %489 = vmatprep.subr.bf16.mxu0 0
    %490 = vmatpush1.bf16.msra.mxu0 %v473
    %491 = vmatprep.subr.bf16.mxu0 0
    %492 = vmatpush1.bf16.msra.mxu0 %v474
    %493 = vmatprep.subr.bf16.mxu0 0
    %494 = vmatpush1.bf16.msra.mxu0 %v475
    %495 = vmatprep.subr.bf16.mxu0 0
    %496 = vmatpush1.bf16.msra.mxu0 %v476
    %497 = vmatprep.subr.bf16.mxu0 0
    %498 = vmatpush1.bf16.msra.mxu0 %v477
    %499 = vmatprep.subr.bf16.mxu0 0
    %500 = vmatpush1.bf16.msra.mxu0 %v478
    %501 = vmatprep.subr.bf16.mxu0 0
    %502 = vmatpush1.bf16.msra.mxu0 %v479
    %503 = vmatprep.subr.bf16.mxu0 0
    %504 = vmatpush1.bf16.msra.mxu0 %v480
    %505 = vmatprep.subr.bf16.mxu0 0
    %506 = vmatpush1.bf16.msra.mxu0 0
    %507 = vmatprep.subr.bf16.mxu0 0
    %508 = vmatpush1.bf16.msra.mxu0 0
    %509 = vmatprep.subr.bf16.mxu0 0
    %510 = vmatpush1.bf16.msra.mxu0 0
    %511 = vmatprep.subr.bf16.mxu0 0
    %512 = vmatpush1.bf16.msra.mxu0 0
    %513 = vmatprep.subr.bf16.mxu0 0
    %514 = vmatpush1.bf16.msra.mxu0 0
    %515 = vmatprep.subr.bf16.mxu0 0
    %516 = vmatpush1.bf16.msra.mxu0 0
    %517 = vmatprep.subr.bf16.mxu0 0
    %518 = vmatpush1.bf16.msra.mxu0 0
    %519 = vmatprep.subr.bf16.mxu0 0
    %520 = vmatpush1.bf16.msra.mxu0 0
    %521 = vmatprep.mubr.bf16.mxu0 0
    %522 = vmatmul.mubr.bf16.gmra.mrb[0].mxu0 %v427
    %v523 = vpop.f32.mrb[0].mxu0
    %v524 = vadd.f32 0.0, %v523
    %v525 = vpop.f32.mrb[0].mxu0
    %v526 = vpop.f32.mrb[0].mxu0
    %v527 = vadd.f32 0.0, %v526
    %v528 = vpop.f32.mrb[0].mxu0
    %529 = vmatprep.mubr.bf16.mxu0 0
    %530 = vmatmul.mubr.bf16.gmra.mrb[0].mxu0 %v429
    %v531 = vpop.f32.mrb[0].mxu0
    %v532 = vadd.f32 0.0, %v531
    %v533 = vpop.f32.mrb[0].mxu0
    %v534 = vpop.f32.mrb[0].mxu0
    %v535 = vadd.f32 0.0, %v534
    %v536 = vpop.f32.mrb[0].mxu0
    %537 = vmatprep.mubr.bf16.mxu0 0
    %538 = vmatmul.mubr.bf16.gmra.mrb[0].mxu0 %v431
    %v539 = vpop.f32.mrb[0].mxu0
    %v540 = vadd.f32 0.0, %v539
    %v541 = vpop.f32.mrb[0].mxu0
    %v542 = vpop.f32.mrb[0].mxu0
    %v543 = vadd.f32 0.0, %v542
    %v544 = vpop.f32.mrb[0].mxu0
    %545 = vmatprep.mubr.bf16.mxu0 0
    %546 = vmatmul.mubr.bf16.gmra.mrb[0].mxu0 %v433
    %v547 = vpop.f32.mrb[0].mxu0
    %v548 = vadd.f32 0.0, %v547
    %v549 = vpop.f32.mrb[0].mxu0
    %v550 = vpop.f32.mrb[0].mxu0
    %v551 = vadd.f32 0.0, %v550
    %v552 = vpop.f32.mrb[0].mxu0
    %553 = vmatprep.mubr.bf16.mxu0 0
    %554 = vmatmul.mubr.bf16.gmra.mrb[0].mxu0 %v435
    %v555 = vpop.f32.mrb[0].mxu0
    %v556 = vadd.f32 0.0, %v555
    %v557 = vpop.f32.mrb[0].mxu0
    %v558 = vpop.f32.mrb[0].mxu0
    %v559 = vadd.f32 0.0, %v558
    %v560 = vpop.f32.mrb[0].mxu0
    %561 = vdwg.mxu0
    %v562 = vadd.f32 %v365, %v524
    %v563 = vadd.f32 %v368, %v527
    %v564 = vadd.f32 %v373, %v532
    %v565 = vadd.f32 %v376, %v535
    %v566 = vadd.f32 %v381, %v540
    %v567 = vadd.f32 %v384, %v543
    %v568 = vadd.f32 %v389, %v548
    %v569 = vadd.f32 %v392, %v551
    %v570 = vadd.f32 %v397, %v556
    %v571 = vadd.f32 %v400, %v559
    %v572 = vld [vmem:[%s0 + $0x4] sm:$0xe]
    %v573 = vld [vmem:[%s0 + $0x8] sm:$0xf]
    %v574 = vld [vmem:[%s0 + $0xc] sm:$0xf]
    %v575 = vld [vmem:[%s0 + $0x10] sm:$0xf]
    %v576 = vld [vmem:[%s0 + $0x14] sm:$0xf]
    %v577 = vld [vmem:[%s0 + $0x18] sm:$0xf]
    %v578 = vld [vmem:[%s0 + $0x1c] sm:$0xf]
    %v579 = vld [vmem:[%s0 + $0x20] sm:$0xf]
    %v580 = vld [vmem:[%s0 + $0x24] sm:$0xf]
    %v581 = vld [vmem:[%s0 + $0x28] sm:$0xf]
    %v582 = vld [vmem:[%s0 + $0x2c] sm:$0x1]
    %s583 = scalar_lea.vmem [#allocation2], 192
    %v584 = vld [vmem:[%s583] sm:$0xf]
    %v585 = vld [vmem:[%s583 + $0x4] sm:$0xf]
    %v586 = vld [vmem:[%s583 + $0x8] sm:$0xf]
    %v587 = vld [vmem:[%s583 + $0xc] sm:$0xf]
    %v588 = vld [vmem:[%s583 + $0x10] sm:$0xf]
    %v589 = vld [vmem:[%s583 + $0x14] sm:$0xf]
    %v590 = vld [vmem:[%s583 + $0x18] sm:$0xf]
    %v591 = vld [vmem:[%s583 + $0x1c] sm:$0xf]
    %v592 = vld [vmem:[%s583 + $0x20] sm:$0xf]
    %v593 = vld [vmem:[%s583 + $0x24] sm:$0xf]
    %v594 = vld [vmem:[%s583 + $0x28] sm:$0xf]
    %v595 = vld [vmem:[%s583 + $0x2c] sm:$0xf]
    %v596 = vld [vmem:[%s583 + $0x30] sm:$0xf]
    %v597 = vld [vmem:[%s583 + $0x34] sm:$0xf]
    %v598 = vld [vmem:[%s583 + $0x38] sm:$0xf]
    %v599 = vld [vmem:[%s583 + $0x3c] sm:$0xf]
    %v611 = vunpack.c.l.b16 %v572
    %v612 = vunpack.c.l.b16 %v573
    %v613 = vunpack.c.l.b16 %v574
    %v614 = vunpack.c.l.b16 %v575
    %v615 = vunpack.c.l.b16 %v576
    %v616 = vunpack.c.l.b16 %v577
    %v617 = vunpack.c.l.b16 %v578
    %v618 = vunpack.c.l.b16 %v579
    %v619 = vunpack.c.l.b16 %v580
    %v620 = vunpack.c.l.b16 %v581
    %v621 = vunpack.c.l.b16 %v582
    %v622 = vpack.c.b16 %v612, %v611
    %v623 = vpack.c.b16 %v614, %v613
    %v624 = vpack.c.b16 %v616, %v615
    %v625 = vpack.c.b16 %v618, %v617
    %v626 = vpack.c.b16 %v620, %v619
    %v627 = vpack.c.b16 %v621, %v621
    %v628 = vrot.slane %v622, 1
    %v629 = vrot.slane %v623, 1
    %v630 = vsel %vm424, %v628, %v629
    %v631 = vrot.slane %v624, 1
    %v632 = vsel %vm424, %v629, %v631
    %v633 = vrot.slane %v625, 1
    %v634 = vsel %vm424, %v631, %v633
    %v635 = vrot.slane %v626, 1
    %v636 = vsel %vm424, %v633, %v635
    %v637 = vrot.slane %v627, 1
    %v638 = vsel %vm424, %v635, %v637
    %v660 = vunpack.c.l.b16 %v584
    %v661 = vunpack.c.l.b16 %v585
    %v662 = vunpack.c.l.b16 %v586
    %v663 = vunpack.c.l.b16 %v587
    %v664 = vunpack.c.l.b16 %v588
    %v665 = vunpack.c.l.b16 %v589
    %v666 = vunpack.c.l.b16 %v590
    %v667 = vunpack.c.l.b16 %v591
    %v668 = vunpack.c.l.b16 %v592
    %v669 = vunpack.c.l.b16 %v593
    %v670 = vunpack.c.l.b16 %v594
    %v671 = vunpack.c.l.b16 %v595
    %v672 = vunpack.c.l.b16 %v596
    %v673 = vunpack.c.l.b16 %v597
    %v674 = vunpack.c.l.b16 %v598
    %v675 = vunpack.c.l.b16 %v599
    %v676 = vpack.c.b16 %v661, %v660
    %v677 = vpack.c.b16 %v663, %v662
    %v678 = vpack.c.b16 %v665, %v664
    %v679 = vpack.c.b16 %v667, %v666
    %v680 = vpack.c.b16 %v669, %v668
    %v681 = vpack.c.b16 %v671, %v670
    %v682 = vpack.c.b16 %v673, %v672
    %v683 = vpack.c.b16 %v675, %v674
    %692 = vmatprep.subr.bf16.mxu0 0
    %693 = vmatpush1.bf16.msra.mxu0 %v676
    %694 = vmatprep.subr.bf16.mxu0 0
    %695 = vmatpush1.bf16.msra.mxu0 %v677
    %696 = vmatprep.subr.bf16.mxu0 0
    %697 = vmatpush1.bf16.msra.mxu0 %v678
    %698 = vmatprep.subr.bf16.mxu0 0
    %699 = vmatpush1.bf16.msra.mxu0 %v679
    %700 = vmatprep.subr.bf16.mxu0 0
    %701 = vmatpush1.bf16.msra.mxu0 %v680
    %702 = vmatprep.subr.bf16.mxu0 0
    %703 = vmatpush1.bf16.msra.mxu0 %v681
    %704 = vmatprep.subr.bf16.mxu0 0
    %705 = vmatpush1.bf16.msra.mxu0 %v682
    %706 = vmatprep.subr.bf16.mxu0 0
    %707 = vmatpush1.bf16.msra.mxu0 %v683
    %708 = vmatprep.subr.bf16.mxu0 0
    %709 = vmatpush1.bf16.msra.mxu0 0
    %710 = vmatprep.subr.bf16.mxu0 0
    %711 = vmatpush1.bf16.msra.mxu0 0
    %712 = vmatprep.subr.bf16.mxu0 0
    %713 = vmatpush1.bf16.msra.mxu0 0
    %714 = vmatprep.subr.bf16.mxu0 0
    %715 = vmatpush1.bf16.msra.mxu0 0
    %716 = vmatprep.subr.bf16.mxu0 0
    %717 = vmatpush1.bf16.msra.mxu0 0
    %718 = vmatprep.subr.bf16.mxu0 0
    %719 = vmatpush1.bf16.msra.mxu0 0
    %720 = vmatprep.subr.bf16.mxu0 0
    %721 = vmatpush1.bf16.msra.mxu0 0
    %722 = vmatprep.subr.bf16.mxu0 0
    %723 = vmatpush1.bf16.msra.mxu0 0
    %724 = vmatprep.mubr.bf16.mxu0 0
    %725 = vmatmul.mubr.bf16.gmra.mrb[0].mxu0 %v630
    %v726 = vpop.f32.mrb[0].mxu0
    %v727 = vadd.f32 0.0, %v726
    %v728 = vpop.f32.mrb[0].mxu0
    %v729 = vpop.f32.mrb[0].mxu0
    %v730 = vadd.f32 0.0, %v729
    %v731 = vpop.f32.mrb[0].mxu0
    %732 = vmatprep.mubr.bf16.mxu0 0
    %733 = vmatmul.mubr.bf16.gmra.mrb[0].mxu0 %v632
    %v734 = vpop.f32.mrb[0].mxu0
    %v735 = vadd.f32 0.0, %v734
    %v736 = vpop.f32.mrb[0].mxu0
    %v737 = vpop.f32.mrb[0].mxu0
    %v738 = vadd.f32 0.0, %v737
    %v739 = vpop.f32.mrb[0].mxu0
    %740 = vmatprep.mubr.bf16.mxu0 0
    %741 = vmatmul.mubr.bf16.gmra.mrb[0].mxu0 %v634
    %v742 = vpop.f32.mrb[0].mxu0
    %v743 = vadd.f32 0.0, %v742
    %v744 = vpop.f32.mrb[0].mxu0
    %v745 = vpop.f32.mrb[0].mxu0
    %v746 = vadd.f32 0.0, %v745
    %v747 = vpop.f32.mrb[0].mxu0
    %748 = vmatprep.mubr.bf16.mxu0 0
    %749 = vmatmul.mubr.bf16.gmra.mrb[0].mxu0 %v636
    %v750 = vpop.f32.mrb[0].mxu0
    %v751 = vadd.f32 0.0, %v750
    %v752 = vpop.f32.mrb[0].mxu0
    %v753 = vpop.f32.mrb[0].mxu0
    %v754 = vadd.f32 0.0, %v753
    %v755 = vpop.f32.mrb[0].mxu0
    %756 = vmatprep.mubr.bf16.mxu0 0
    %757 = vmatmul.mubr.bf16.gmra.mrb[0].mxu0 %v638
    %v758 = vpop.f32.mrb[0].mxu0
    %v759 = vadd.f32 0.0, %v758
    %v760 = vpop.f32.mrb[0].mxu0
    %v761 = vpop.f32.mrb[0].mxu0
    %v762 = vadd.f32 0.0, %v761
    %v763 = vpop.f32.mrb[0].mxu0
    %764 = vdwg.mxu0
    %v765 = vadd.f32 %v562, %v727
    %v766 = vadd.f32 %v563, %v730
    %v767 = vadd.f32 %v564, %v735
    %v768 = vadd.f32 %v565, %v738
    %v769 = vadd.f32 %v566, %v743
    %v770 = vadd.f32 %v567, %v746
    %v771 = vadd.f32 %v568, %v751
    %v772 = vadd.f32 %v569, %v754
    %v773 = vadd.f32 %v570, %v759
    %v774 = vadd.f32 %v571, %v762
    %v775 = vld [vmem:[%s0 + $0x2c] sm:$0x3]
    %s776 = scalar_lea.vmem [#allocation2], 256
    %v777 = vld [vmem:[%s776] sm:$0xf]
    %v778 = vld [vmem:[%s776 + $0x4] sm:$0xf]
    %v779 = vld [vmem:[%s776 + $0x8] sm:$0xf]
    %v780 = vld [vmem:[%s776 + $0xc] sm:$0xf]
    %v781 = vld [vmem:[%s776 + $0x10] sm:$0xf]
    %v782 = vld [vmem:[%s776 + $0x14] sm:$0xf]
    %v783 = vld [vmem:[%s776 + $0x18] sm:$0xf]
    %v784 = vld [vmem:[%s776 + $0x1c] sm:$0xf]
    %v785 = vld [vmem:[%s776 + $0x20] sm:$0xf]
    %v786 = vld [vmem:[%s776 + $0x24] sm:$0xf]
    %v787 = vld [vmem:[%s776 + $0x28] sm:$0xf]
    %v788 = vld [vmem:[%s776 + $0x2c] sm:$0xf]
    %v789 = vld [vmem:[%s776 + $0x30] sm:$0xf]
    %v790 = vld [vmem:[%s776 + $0x34] sm:$0xf]
    %v791 = vld [vmem:[%s776 + $0x38] sm:$0xf]
    %v792 = vld [vmem:[%s776 + $0x3c] sm:$0xf]
    %v794 = vunpack.c.l.b16 %v775
    %v795 = vpack.c.b16 %v794, %v794
    %vm796 = vsmask.f32 6400
    %v798 = vshrl.u32 %v622, 16
    %v800 = vrot.slane %v798, 1
    %v801 = vshll.u32 %v622, 16
    %v803 = vrot.slane %v801, 2
    %v804 = vor.u32 %v800, %v803
    %v806 = vshrl.u32 %v623, 16
    %v808 = vrot.slane %v806, 1
    %v809 = vshll.u32 %v623, 16
    %v811 = vrot.slane %v809, 2
    %v812 = vor.u32 %v808, %v811
    %v813 = vsel %vm796, %v804, %v812
    %v815 = vshrl.u32 %v624, 16
    %v817 = vrot.slane %v815, 1
    %v818 = vshll.u32 %v624, 16
    %v820 = vrot.slane %v818, 2
    %v821 = vor.u32 %v817, %v820
    %v822 = vsel %vm796, %v812, %v821
    %v824 = vshrl.u32 %v625, 16
    %v826 = vrot.slane %v824, 1
    %v827 = vshll.u32 %v625, 16
    %v829 = vrot.slane %v827, 2
    %v830 = vor.u32 %v826, %v829
    %v831 = vsel %vm796, %v821, %v830
    %v833 = vshrl.u32 %v626, 16
    %v835 = vrot.slane %v833, 1
    %v836 = vshll.u32 %v626, 16
    %v838 = vrot.slane %v836, 2
    %v839 = vor.u32 %v835, %v838
    %v840 = vsel %vm796, %v830, %v839
    %v842 = vshrl.u32 %v795, 16
    %v844 = vrot.slane %v842, 1
    %v845 = vshll.u32 %v795, 16
    %v847 = vrot.slane %v845, 2
    %v848 = vor.u32 %v844, %v847
    %v849 = vsel %vm796, %v839, %v848
    %v871 = vunpack.c.l.b16 %v777
    %v872 = vunpack.c.l.b16 %v778
    %v873 = vunpack.c.l.b16 %v779
    %v874 = vunpack.c.l.b16 %v780
    %v875 = vunpack.c.l.b16 %v781
    %v876 = vunpack.c.l.b16 %v782
    %v877 = vunpack.c.l.b16 %v783
    %v878 = vunpack.c.l.b16 %v784
    %v879 = vunpack.c.l.b16 %v785
    %v880 = vunpack.c.l.b16 %v786
    %v881 = vunpack.c.l.b16 %v787
    %v882 = vunpack.c.l.b16 %v788
    %v883 = vunpack.c.l.b16 %v789
    %v884 = vunpack.c.l.b16 %v790
    %v885 = vunpack.c.l.b16 %v791
    %v886 = vunpack.c.l.b16 %v792
    %v887 = vpack.c.b16 %v872, %v871
    %v888 = vpack.c.b16 %v874, %v873
    %v889 = vpack.c.b16 %v876, %v875
    %v890 = vpack.c.b16 %v878, %v877
    %v891 = vpack.c.b16 %v880, %v879
    %v892 = vpack.c.b16 %v882, %v881
    %v893 = vpack.c.b16 %v884, %v883
    %v894 = vpack.c.b16 %v886, %v885
    %903 = vmatprep.subr.bf16.mxu0 0
    %904 = vmatpush1.bf16.msra.mxu0 %v887
    %905 = vmatprep.subr.bf16.mxu0 0
    %906 = vmatpush1.bf16.msra.mxu0 %v888
    %907 = vmatprep.subr.bf16.mxu0 0
    %908 = vmatpush1.bf16.msra.mxu0 %v889
    %909 = vmatprep.subr.bf16.mxu0 0
    %910 = vmatpush1.bf16.msra.mxu0 %v890
    %911 = vmatprep.subr.bf16.mxu0 0
    %912 = vmatpush1.bf16.msra.mxu0 %v891
    %913 = vmatprep.subr.bf16.mxu0 0
    %914 = vmatpush1.bf16.msra.mxu0 %v892
    %915 = vmatprep.subr.bf16.mxu0 0
    %916 = vmatpush1.bf16.msra.mxu0 %v893
    %917 = vmatprep.subr.bf16.mxu0 0
    %918 = vmatpush1.bf16.msra.mxu0 %v894
    %919 = vmatprep.subr.bf16.mxu0 0
    %920 = vmatpush1.bf16.msra.mxu0 0
    %921 = vmatprep.subr.bf16.mxu0 0
    %922 = vmatpush1.bf16.msra.mxu0 0
    %923 = vmatprep.subr.bf16.mxu0 0
    %924 = vmatpush1.bf16.msra.mxu0 0
    %925 = vmatprep.subr.bf16.mxu0 0
    %926 = vmatpush1.bf16.msra.mxu0 0
    %927 = vmatprep.subr.bf16.mxu0 0
    %928 = vmatpush1.bf16.msra.mxu0 0
    %929 = vmatprep.subr.bf16.mxu0 0
    %930 = vmatpush1.bf16.msra.mxu0 0
    %931 = vmatprep.subr.bf16.mxu0 0
    %932 = vmatpush1.bf16.msra.mxu0 0
    %933 = vmatprep.subr.bf16.mxu0 0
    %934 = vmatpush1.bf16.msra.mxu0 0
    %935 = vmatprep.mubr.bf16.mxu0 0
    %936 = vmatmul.mubr.bf16.gmra.mrb[0].mxu0 %v813
    %v937 = vpop.f32.mrb[0].mxu0
    %v938 = vadd.f32 0.0, %v937
    %v939 = vpop.f32.mrb[0].mxu0
    %v940 = vpop.f32.mrb[0].mxu0
    %v941 = vadd.f32 0.0, %v940
    %v942 = vpop.f32.mrb[0].mxu0
    %943 = vmatprep.mubr.bf16.mxu0 0
    %944 = vmatmul.mubr.bf16.gmra.mrb[0].mxu0 %v822
    %v945 = vpop.f32.mrb[0].mxu0
    %v946 = vadd.f32 0.0, %v945
    %v947 = vpop.f32.mrb[0].mxu0
    %v948 = vpop.f32.mrb[0].mxu0
    %v949 = vadd.f32 0.0, %v948
    %v950 = vpop.f32.mrb[0].mxu0
    %951 = vmatprep.mubr.bf16.mxu0 0
    %952 = vmatmul.mubr.bf16.gmra.mrb[0].mxu0 %v831
    %v953 = vpop.f32.mrb[0].mxu0
    %v954 = vadd.f32 0.0, %v953
    %v955 = vpop.f32.mrb[0].mxu0
    %v956 = vpop.f32.mrb[0].mxu0
    %v957 = vadd.f32 0.0, %v956
    %v958 = vpop.f32.mrb[0].mxu0
    %959 = vmatprep.mubr.bf16.mxu0 0
    %960 = vmatmul.mubr.bf16.gmra.mrb[0].mxu0 %v840
    %v961 = vpop.f32.mrb[0].mxu0
    %v962 = vadd.f32 0.0, %v961
    %v963 = vpop.f32.mrb[0].mxu0
    %v964 = vpop.f32.mrb[0].mxu0
    %v965 = vadd.f32 0.0, %v964
    %v966 = vpop.f32.mrb[0].mxu0
    %967 = vmatprep.mubr.bf16.mxu0 0
    %968 = vmatmul.mubr.bf16.gmra.mrb[0].mxu0 %v849
    %v969 = vpop.f32.mrb[0].mxu0
    %v970 = vadd.f32 0.0, %v969
    %v971 = vpop.f32.mrb[0].mxu0
    %v972 = vpop.f32.mrb[0].mxu0
    %v973 = vadd.f32 0.0, %v972
    %v974 = vpop.f32.mrb[0].mxu0
    %975 = vdwg.mxu0
    %v976 = vadd.f32 %v765, %v938
    %v977 = vadd.f32 %v766, %v941
    %v978 = vadd.f32 %v767, %v946
    %v979 = vadd.f32 %v768, %v949
    %v980 = vadd.f32 %v769, %v954
    %v981 = vadd.f32 %v770, %v957
    %v982 = vadd.f32 %v771, %v962
    %v983 = vadd.f32 %v772, %v965
    %v984 = vadd.f32 %v773, %v970
    %v985 = vadd.f32 %v774, %v973
    %v986 = vld [vmem:[%s0 + $0x4] sm:$0xc]
    %s987 = scalar_lea.vmem [#allocation2], 320
    %v988 = vld [vmem:[%s987] sm:$0xf]
    %v989 = vld [vmem:[%s987 + $0x4] sm:$0xf]
    %v990 = vld [vmem:[%s987 + $0x8] sm:$0xf]
    %v991 = vld [vmem:[%s987 + $0xc] sm:$0xf]
    %v992 = vld [vmem:[%s987 + $0x10] sm:$0xf]
    %v993 = vld [vmem:[%s987 + $0x14] sm:$0xf]
    %v994 = vld [vmem:[%s987 + $0x18] sm:$0xf]
    %v995 = vld [vmem:[%s987 + $0x1c] sm:$0xf]
    %v996 = vld [vmem:[%s987 + $0x20] sm:$0xf]
    %v997 = vld [vmem:[%s987 + $0x24] sm:$0xf]
    %v998 = vld [vmem:[%s987 + $0x28] sm:$0xf]
    %v999 = vld [vmem:[%s987 + $0x2c] sm:$0xf]
    %v1000 = vld [vmem:[%s987 + $0x30] sm:$0xf]
    %v1001 = vld [vmem:[%s987 + $0x34] sm:$0xf]
    %v1002 = vld [vmem:[%s987 + $0x38] sm:$0xf]
    %v1003 = vld [vmem:[%s987 + $0x3c] sm:$0xf]
    %v1005 = vunpack.c.l.b16 %v986
    %v1006 = vpack.c.b16 %v612, %v1005
    %vm1007 = vcmask 1045504
    %v1008 = vrot.slane %v1006, 2
    %v1009 = vrot.slane %v623, 2
    %v1010 = vsel %vm1007, %v1008, %v1009
    %v1011 = vrot.slane %v624, 2
    %v1012 = vsel %vm1007, %v1009, %v1011
    %v1013 = vrot.slane %v625, 2
    %v1014 = vsel %vm1007, %v1011, %v1013
    %v1015 = vrot.slane %v626, 2
    %v1016 = vsel %vm1007, %v1013, %v1015
    %v1017 = vrot.slane %v795, 2
    %v1018 = vsel %vm1007, %v1015, %v1017
    %v1040 = vunpack.c.l.b16 %v988
    %v1041 = vunpack.c.l.b16 %v989
    %v1042 = vunpack.c.l.b16 %v990
    %v1043 = vunpack.c.l.b16 %v991
    %v1044 = vunpack.c.l.b16 %v992
    %v1045 = vunpack.c.l.b16 %v993
    %v1046 = vunpack.c.l.b16 %v994
    %v1047 = vunpack.c.l.b16 %v995
    %v1048 = vunpack.c.l.b16 %v996
    %v1049 = vunpack.c.l.b16 %v997
    %v1050 = vunpack.c.l.b16 %v998
    %v1051 = vunpack.c.l.b16 %v999
    %v1052 = vunpack.c.l.b16 %v1000
    %v1053 = vunpack.c.l.b16 %v1001
    %v1054 = vunpack.c.l.b16 %v1002
    %v1055 = vunpack.c.l.b16 %v1003
    %v1056 = vpack.c.b16 %v1041, %v1040
    %v1057 = vpack.c.b16 %v1043, %v1042
    %v1058 = vpack.c.b16 %v1045, %v1044
    %v1059 = vpack.c.b16 %v1047, %v1046
    %v1060 = vpack.c.b16 %v1049, %v1048
    %v1061 = vpack.c.b16 %v1051, %v1050
    %v1062 = vpack.c.b16 %v1053, %v1052
    %v1063 = vpack.c.b16 %v1055, %v1054
    %1072 = vmatprep.subr.bf16.mxu0 0
    %1073 = vmatpush1.bf16.msra.mxu0 %v1056
    %1074 = vmatprep.subr.bf16.mxu0 0
    %1075 = vmatpush1.bf16.msra.mxu0 %v1057
    %1076 = vmatprep.subr.bf16.mxu0 0
    %1077 = vmatpush1.bf16.msra.mxu0 %v1058
    %1078 = vmatprep.subr.bf16.mxu0 0
    %1079 = vmatpush1.bf16.msra.mxu0 %v1059
    %1080 = vmatprep.subr.bf16.mxu0 0
    %1081 = vmatpush1.bf16.msra.mxu0 %v1060
    %1082 = vmatprep.subr.bf16.mxu0 0
    %1083 = vmatpush1.bf16.msra.mxu0 %v1061
    %1084 = vmatprep.subr.bf16.mxu0 0
    %1085 = vmatpush1.bf16.msra.mxu0 %v1062
    %1086 = vmatprep.subr.bf16.mxu0 0
    %1087 = vmatpush1.bf16.msra.mxu0 %v1063
    %1088 = vmatprep.subr.bf16.mxu0 0
    %1089 = vmatpush1.bf16.msra.mxu0 0
    %1090 = vmatprep.subr.bf16.mxu0 0
    %1091 = vmatpush1.bf16.msra.mxu0 0
    %1092 = vmatprep.subr.bf16.mxu0 0
    %1093 = vmatpush1.bf16.msra.mxu0 0
    %1094 = vmatprep.subr.bf16.mxu0 0
    %1095 = vmatpush1.bf16.msra.mxu0 0
    %1096 = vmatprep.subr.bf16.mxu0 0
    %1097 = vmatpush1.bf16.msra.mxu0 0
    %1098 = vmatprep.subr.bf16.mxu0 0
    %1099 = vmatpush1.bf16.msra.mxu0 0
    %1100 = vmatprep.subr.bf16.mxu0 0
    %1101 = vmatpush1.bf16.msra.mxu0 0
    %1102 = vmatprep.subr.bf16.mxu0 0
    %1103 = vmatpush1.bf16.msra.mxu0 0
    %1104 = vmatprep.mubr.bf16.mxu0 0
    %1105 = vmatmul.mubr.bf16.gmra.mrb[0].mxu0 %v1010
    %v1106 = vpop.f32.mrb[0].mxu0
    %v1107 = vadd.f32 0.0, %v1106
    %v1108 = vpop.f32.mrb[0].mxu0
    %v1109 = vpop.f32.mrb[0].mxu0
    %v1110 = vadd.f32 0.0, %v1109
    %v1111 = vpop.f32.mrb[0].mxu0
    %1112 = vmatprep.mubr.bf16.mxu0 0
    %1113 = vmatmul.mubr.bf16.gmra.mrb[0].mxu0 %v1012
    %v1114 = vpop.f32.mrb[0].mxu0
    %v1115 = vadd.f32 0.0, %v1114
    %v1116 = vpop.f32.mrb[0].mxu0
    %v1117 = vpop.f32.mrb[0].mxu0
    %v1118 = vadd.f32 0.0, %v1117
    %v1119 = vpop.f32.mrb[0].mxu0
    %1120 = vmatprep.mubr.bf16.mxu0 0
    %1121 = vmatmul.mubr.bf16.gmra.mrb[0].mxu0 %v1014
    %v1122 = vpop.f32.mrb[0].mxu0
    %v1123 = vadd.f32 0.0, %v1122
    %v1124 = vpop.f32.mrb[0].mxu0
    %v1125 = vpop.f32.mrb[0].mxu0
    %v1126 = vadd.f32 0.0, %v1125
    %v1127 = vpop.f32.mrb[0].mxu0
    %1128 = vmatprep.mubr.bf16.mxu0 0
    %1129 = vmatmul.mubr.bf16.gmra.mrb[0].mxu0 %v1016
    %v1130 = vpop.f32.mrb[0].mxu0
    %v1131 = vadd.f32 0.0, %v1130
    %v1132 = vpop.f32.mrb[0].mxu0
    %v1133 = vpop.f32.mrb[0].mxu0
    %v1134 = vadd.f32 0.0, %v1133
    %v1135 = vpop.f32.mrb[0].mxu0
    %1136 = vmatprep.mubr.bf16.mxu0 0
    %1137 = vmatmul.mubr.bf16.gmra.mrb[0].mxu0 %v1018
    %v1138 = vpop.f32.mrb[0].mxu0
    %v1139 = vadd.f32 0.0, %v1138
    %v1140 = vpop.f32.mrb[0].mxu0
    %v1141 = vpop.f32.mrb[0].mxu0
    %v1142 = vadd.f32 0.0, %v1141
    %v1143 = vpop.f32.mrb[0].mxu0
    %1144 = vdwg.mxu0
    %v1145 = vadd.f32 %v976, %v1107
    %v1146 = vadd.f32 %v977, %v1110
    %v1147 = vadd.f32 %v978, %v1115
    %v1148 = vadd.f32 %v979, %v1118
    %v1149 = vadd.f32 %v980, %v1123
    %v1150 = vadd.f32 %v981, %v1126
    %v1151 = vadd.f32 %v982, %v1131
    %v1152 = vadd.f32 %v983, %v1134
    %v1153 = vadd.f32 %v984, %v1139
    %v1154 = vadd.f32 %v985, %v1142
    %v1155 = vld [vmem:[%s0 + $0x8] sm:$0xc]
    %v1156 = vld [vmem:[%s0 + $0xc] sm:$0xf]
    %v1157 = vld [vmem:[%s0 + $0x10] sm:$0xf]
    %v1158 = vld [vmem:[%s0 + $0x14] sm:$0xf]
    %v1159 = vld [vmem:[%s0 + $0x18] sm:$0xf]
    %v1160 = vld [vmem:[%s0 + $0x1c] sm:$0xf]
    %v1161 = vld [vmem:[%s0 + $0x20] sm:$0xf]
    %v1162 = vld [vmem:[%s0 + $0x24] sm:$0xf]
    %v1163 = vld [vmem:[%s0 + $0x28] sm:$0xf]
    %v1164 = vld [vmem:[%s0 + $0x2c] sm:$0xf]
    %v1165 = vld [vmem:[%s0 + $0x30] sm:$0x3]
    %s1166 = scalar_lea.vmem [#allocation2], 384
    %v1167 = vld [vmem:[%s1166] sm:$0xf]
    %v1168 = vld [vmem:[%s1166 + $0x4] sm:$0xf]
    %v1169 = vld [vmem:[%s1166 + $0x8] sm:$0xf]
    %v1170 = vld [vmem:[%s1166 + $0xc] sm:$0xf]
    %v1171 = vld [vmem:[%s1166 + $0x10] sm:$0xf]
    %v1172 = vld [vmem:[%s1166 + $0x14] sm:$0xf]
    %v1173 = vld [vmem:[%s1166 + $0x18] sm:$0xf]
    %v1174 = vld [vmem:[%s1166 + $0x1c] sm:$0xf]
    %v1175 = vld [vmem:[%s1166 + $0x20] sm:$0xf]
    %v1176 = vld [vmem:[%s1166 + $0x24] sm:$0xf]
    %v1177 = vld [vmem:[%s1166 + $0x28] sm:$0xf]
    %v1178 = vld [vmem:[%s1166 + $0x2c] sm:$0xf]
    %v1179 = vld [vmem:[%s1166 + $0x30] sm:$0xf]
    %v1180 = vld [vmem:[%s1166 + $0x34] sm:$0xf]
    %v1181 = vld [vmem:[%s1166 + $0x38] sm:$0xf]
    %v1182 = vld [vmem:[%s1166 + $0x3c] sm:$0xf]
    %v1194 = vunpack.c.l.b16 %v1155
    %v1195 = vunpack.c.l.b16 %v1156
    %v1196 = vunpack.c.l.b16 %v1157
    %v1197 = vunpack.c.l.b16 %v1158
    %v1198 = vunpack.c.l.b16 %v1159
    %v1199 = vunpack.c.l.b16 %v1160
    %v1200 = vunpack.c.l.b16 %v1161
    %v1201 = vunpack.c.l.b16 %v1162
    %v1202 = vunpack.c.l.b16 %v1163
    %v1203 = vunpack.c.l.b16 %v1164
    %v1204 = vunpack.c.l.b16 %v1165
    %v1205 = vpack.c.b16 %v1195, %v1194
    %v1206 = vpack.c.b16 %v1197, %v1196
    %v1207 = vpack.c.b16 %v1199, %v1198
    %v1208 = vpack.c.b16 %v1201, %v1200
    %v1209 = vpack.c.b16 %v1203, %v1202
    %v1210 = vpack.c.b16 %v1204, %v1204
    %v1211 = vrot.slane %v1205, 2
    %v1212 = vrot.slane %v1206, 2
    %v1213 = vsel %vm1007, %v1211, %v1212
    %v1214 = vrot.slane %v1207, 2
    %v1215 = vsel %vm1007, %v1212, %v1214
    %v1216 = vrot.slane %v1208, 2
    %v1217 = vsel %vm1007, %v1214, %v1216
    %v1218 = vrot.slane %v1209, 2
    %v1219 = vsel %vm1007, %v1216, %v1218
    %v1220 = vrot.slane %v1210, 2
    %v1221 = vsel %vm1007, %v1218, %v1220
    %v1243 = vunpack.c.l.b16 %v1167
    %v1244 = vunpack.c.l.b16 %v1168
    %v1245 = vunpack.c.l.b16 %v1169
    %v1246 = vunpack.c.l.b16 %v1170
    %v1247 = vunpack.c.l.b16 %v1171
    %v1248 = vunpack.c.l.b16 %v1172
    %v1249 = vunpack.c.l.b16 %v1173
    %v1250 = vunpack.c.l.b16 %v1174
    %v1251 = vunpack.c.l.b16 %v1175
    %v1252 = vunpack.c.l.b16 %v1176
    %v1253 = vunpack.c.l.b16 %v1177
    %v1254 = vunpack.c.l.b16 %v1178
    %v1255 = vunpack.c.l.b16 %v1179
    %v1256 = vunpack.c.l.b16 %v1180
    %v1257 = vunpack.c.l.b16 %v1181
    %v1258 = vunpack.c.l.b16 %v1182
    %v1259 = vpack.c.b16 %v1244, %v1243
    %v1260 = vpack.c.b16 %v1246, %v1245
    %v1261 = vpack.c.b16 %v1248, %v1247
    %v1262 = vpack.c.b16 %v1250, %v1249
    %v1263 = vpack.c.b16 %v1252, %v1251
    %v1264 = vpack.c.b16 %v1254, %v1253
    %v1265 = vpack.c.b16 %v1256, %v1255
    %v1266 = vpack.c.b16 %v1258, %v1257
    %1275 = vmatprep.subr.bf16.mxu0 0
    %1276 = vmatpush1.bf16.msra.mxu0 %v1259
    %1277 = vmatprep.subr.bf16.mxu0 0
    %1278 = vmatpush1.bf16.msra.mxu0 %v1260
    %1279 = vmatprep.subr.bf16.mxu0 0
    %1280 = vmatpush1.bf16.msra.mxu0 %v1261
    %1281 = vmatprep.subr.bf16.mxu0 0
    %1282 = vmatpush1.bf16.msra.mxu0 %v1262
    %1283 = vmatprep.subr.bf16.mxu0 0
    %1284 = vmatpush1.bf16.msra.mxu0 %v1263
    %1285 = vmatprep.subr.bf16.mxu0 0
    %1286 = vmatpush1.bf16.msra.mxu0 %v1264
    %1287 = vmatprep.subr.bf16.mxu0 0
    %1288 = vmatpush1.bf16.msra.mxu0 %v1265
    %1289 = vmatprep.subr.bf16.mxu0 0
    %1290 = vmatpush1.bf16.msra.mxu0 %v1266
    %1291 = vmatprep.subr.bf16.mxu0 0
    %1292 = vmatpush1.bf16.msra.mxu0 0
    %1293 = vmatprep.subr.bf16.mxu0 0
    %1294 = vmatpush1.bf16.msra.mxu0 0
    %1295 = vmatprep.subr.bf16.mxu0 0
    %1296 = vmatpush1.bf16.msra.mxu0 0
    %1297 = vmatprep.subr.bf16.mxu0 0
    %1298 = vmatpush1.bf16.msra.mxu0 0
    %1299 = vmatprep.subr.bf16.mxu0 0
    %1300 = vmatpush1.bf16.msra.mxu0 0
    %1301 = vmatprep.subr.bf16.mxu0 0
    %1302 = vmatpush1.bf16.msra.mxu0 0
    %1303 = vmatprep.subr.bf16.mxu0 0
    %1304 = vmatpush1.bf16.msra.mxu0 0
    %1305 = vmatprep.subr.bf16.mxu0 0
    %1306 = vmatpush1.bf16.msra.mxu0 0
    %1307 = vmatprep.mubr.bf16.mxu0 0
    %1308 = vmatmul.mubr.bf16.gmra.mrb[0].mxu0 %v1213
    %v1309 = vpop.f32.mrb[0].mxu0
    %v1310 = vadd.f32 0.0, %v1309
    %v1311 = vpop.f32.mrb[0].mxu0
    %v1312 = vpop.f32.mrb[0].mxu0
    %v1313 = vadd.f32 0.0, %v1312
    %v1314 = vpop.f32.mrb[0].mxu0
    %1315 = vmatprep.mubr.bf16.mxu0 0
    %1316 = vmatmul.mubr.bf16.gmra.mrb[0].mxu0 %v1215
    %v1317 = vpop.f32.mrb[0].mxu0
    %v1318 = vadd.f32 0.0, %v1317
    %v1319 = vpop.f32.mrb[0].mxu0
    %v1320 = vpop.f32.mrb[0].mxu0
    %v1321 = vadd.f32 0.0, %v1320
    %v1322 = vpop.f32.mrb[0].mxu0
    %1323 = vmatprep.mubr.bf16.mxu0 0
    %1324 = vmatmul.mubr.bf16.gmra.mrb[0].mxu0 %v1217
    %v1325 = vpop.f32.mrb[0].mxu0
    %v1326 = vadd.f32 0.0, %v1325
    %v1327 = vpop.f32.mrb[0].mxu0
    %v1328 = vpop.f32.mrb[0].mxu0
    %v1329 = vadd.f32 0.0, %v1328
    %v1330 = vpop.f32.mrb[0].mxu0
    %1331 = vmatprep.mubr.bf16.mxu0 0
    %1332 = vmatmul.mubr.bf16.gmra.mrb[0].mxu0 %v1219
    %v1333 = vpop.f32.mrb[0].mxu0
    %v1334 = vadd.f32 0.0, %v1333
    %v1335 = vpop.f32.mrb[0].mxu0
    %v1336 = vpop.f32.mrb[0].mxu0
    %v1337 = vadd.f32 0.0, %v1336
    %v1338 = vpop.f32.mrb[0].mxu0
    %1339 = vmatprep.mubr.bf16.mxu0 0
    %1340 = vmatmul.mubr.bf16.gmra.mrb[0].mxu0 %v1221
    %v1341 = vpop.f32.mrb[0].mxu0
    %v1342 = vadd.f32 0.0, %v1341
    %v1343 = vpop.f32.mrb[0].mxu0
    %v1344 = vpop.f32.mrb[0].mxu0
    %v1345 = vadd.f32 0.0, %v1344
    %v1346 = vpop.f32.mrb[0].mxu0
    %1347 = vdwg.mxu0
    %v1348 = vadd.f32 %v1145, %v1310
    %v1349 = vadd.f32 %v1146, %v1313
    %v1350 = vadd.f32 %v1147, %v1318
    %v1351 = vadd.f32 %v1148, %v1321
    %v1352 = vadd.f32 %v1149, %v1326
    %v1353 = vadd.f32 %v1150, %v1329
    %v1354 = vadd.f32 %v1151, %v1334
    %v1355 = vadd.f32 %v1152, %v1337
    %v1356 = vadd.f32 %v1153, %v1342
    %v1357 = vadd.f32 %v1154, %v1345
    %v1358 = vld [vmem:[%s0 + $0x30] sm:$0x7]
    %s1359 = scalar_lea.vmem [#allocation2], 448
    %v1360 = vld [vmem:[%s1359] sm:$0xf]
    %v1361 = vld [vmem:[%s1359 + $0x4] sm:$0xf]
    %v1362 = vld [vmem:[%s1359 + $0x8] sm:$0xf]
    %v1363 = vld [vmem:[%s1359 + $0xc] sm:$0xf]
    %v1364 = vld [vmem:[%s1359 + $0x10] sm:$0xf]
    %v1365 = vld [vmem:[%s1359 + $0x14] sm:$0xf]
    %v1366 = vld [vmem:[%s1359 + $0x18] sm:$0xf]
    %v1367 = vld [vmem:[%s1359 + $0x1c] sm:$0xf]
    %v1368 = vld [vmem:[%s1359 + $0x20] sm:$0xf]
    %v1369 = vld [vmem:[%s1359 + $0x24] sm:$0xf]
    %v1370 = vld [vmem:[%s1359 + $0x28] sm:$0xf]
    %v1371 = vld [vmem:[%s1359 + $0x2c] sm:$0xf]
    %v1372 = vld [vmem:[%s1359 + $0x30] sm:$0xf]
    %v1373 = vld [vmem:[%s1359 + $0x34] sm:$0xf]
    %v1374 = vld [vmem:[%s1359 + $0x38] sm:$0xf]
    %v1375 = vld [vmem:[%s1359 + $0x3c] sm:$0xf]
    %v1377 = vunpack.c.l.b16 %v1358
    %v1378 = vpack.c.b16 %v1377, %v1377
    %vm1379 = vsmask.f32 5376
    %v1381 = vshrl.u32 %v1205, 16
    %v1383 = vrot.slane %v1381, 2
    %v1384 = vshll.u32 %v1205, 16
    %v1386 = vrot.slane %v1384, 3
    %v1387 = vor.u32 %v1383, %v1386
    %v1389 = vshrl.u32 %v1206, 16
    %v1391 = vrot.slane %v1389, 2
    %v1392 = vshll.u32 %v1206, 16
    %v1394 = vrot.slane %v1392, 3
    %v1395 = vor.u32 %v1391, %v1394
    %v1396 = vsel %vm1379, %v1387, %v1395
    %v1398 = vshrl.u32 %v1207, 16
    %v1400 = vrot.slane %v1398, 2
    %v1401 = vshll.u32 %v1207, 16
    %v1403 = vrot.slane %v1401, 3
    %v1404 = vor.u32 %v1400, %v1403
    %v1405 = vsel %vm1379, %v1395, %v1404
    %v1407 = vshrl.u32 %v1208, 16
    %v1409 = vrot.slane %v1407, 2
    %v1410 = vshll.u32 %v1208, 16
    %v1412 = vrot.slane %v1410, 3
    %v1413 = vor.u32 %v1409, %v1412
    %v1414 = vsel %vm1379, %v1404, %v1413
    %v1416 = vshrl.u32 %v1209, 16
    %v1418 = vrot.slane %v1416, 2
    %v1419 = vshll.u32 %v1209, 16
    %v1421 = vrot.slane %v1419, 3
    %v1422 = vor.u32 %v1418, %v1421
    %v1423 = vsel %vm1379, %v1413, %v1422
    %v1425 = vshrl.u32 %v1378, 16
    %v1427 = vrot.slane %v1425, 2
    %v1428 = vshll.u32 %v1378, 16
    %v1430 = vrot.slane %v1428, 3
    %v1431 = vor.u32 %v1427, %v1430
    %v1432 = vsel %vm1379, %v1422, %v1431
    %v1454 = vunpack.c.l.b16 %v1360
    %v1455 = vunpack.c.l.b16 %v1361
    %v1456 = vunpack.c.l.b16 %v1362
    %v1457 = vunpack.c.l.b16 %v1363
    %v1458 = vunpack.c.l.b16 %v1364
    %v1459 = vunpack.c.l.b16 %v1365
    %v1460 = vunpack.c.l.b16 %v1366
    %v1461 = vunpack.c.l.b16 %v1367
    %v1462 = vunpack.c.l.b16 %v1368
    %v1463 = vunpack.c.l.b16 %v1369
    %v1464 = vunpack.c.l.b16 %v1370
    %v1465 = vunpack.c.l.b16 %v1371
    %v1466 = vunpack.c.l.b16 %v1372
    %v1467 = vunpack.c.l.b16 %v1373
    %v1468 = vunpack.c.l.b16 %v1374
    %v1469 = vunpack.c.l.b16 %v1375
    %v1470 = vpack.c.b16 %v1455, %v1454
    %v1471 = vpack.c.b16 %v1457, %v1456
    %v1472 = vpack.c.b16 %v1459, %v1458
    %v1473 = vpack.c.b16 %v1461, %v1460
    %v1474 = vpack.c.b16 %v1463, %v1462
    %v1475 = vpack.c.b16 %v1465, %v1464
    %v1476 = vpack.c.b16 %v1467, %v1466
    %v1477 = vpack.c.b16 %v1469, %v1468
    %1486 = vmatprep.subr.bf16.mxu0 0
    %1487 = vmatpush1.bf16.msra.mxu0 %v1470
    %1488 = vmatprep.subr.bf16.mxu0 0
    %1489 = vmatpush1.bf16.msra.mxu0 %v1471
    %1490 = vmatprep.subr.bf16.mxu0 0
    %1491 = vmatpush1.bf16.msra.mxu0 %v1472
    %1492 = vmatprep.subr.bf16.mxu0 0
    %1493 = vmatpush1.bf16.msra.mxu0 %v1473
    %1494 = vmatprep.subr.bf16.mxu0 0
    %1495 = vmatpush1.bf16.msra.mxu0 %v1474
    %1496 = vmatprep.subr.bf16.mxu0 0
    %1497 = vmatpush1.bf16.msra.mxu0 %v1475
    %1498 = vmatprep.subr.bf16.mxu0 0
    %1499 = vmatpush1.bf16.msra.mxu0 %v1476
    %1500 = vmatprep.subr.bf16.mxu0 0
    %1501 = vmatpush1.bf16.msra.mxu0 %v1477
    %1502 = vmatprep.subr.bf16.mxu0 0
    %1503 = vmatpush1.bf16.msra.mxu0 0
    %1504 = vmatprep.subr.bf16.mxu0 0
    %1505 = vmatpush1.bf16.msra.mxu0 0
    %1506 = vmatprep.subr.bf16.mxu0 0
    %1507 = vmatpush1.bf16.msra.mxu0 0
    %1508 = vmatprep.subr.bf16.mxu0 0
    %1509 = vmatpush1.bf16.msra.mxu0 0
    %1510 = vmatprep.subr.bf16.mxu0 0
    %1511 = vmatpush1.bf16.msra.mxu0 0
    %1512 = vmatprep.subr.bf16.mxu0 0
    %1513 = vmatpush1.bf16.msra.mxu0 0
    %1514 = vmatprep.subr.bf16.mxu0 0
    %1515 = vmatpush1.bf16.msra.mxu0 0
    %1516 = vmatprep.subr.bf16.mxu0 0
    %1517 = vmatpush1.bf16.msra.mxu0 0
    %1518 = vmatprep.mubr.bf16.mxu0 0
    %1519 = vmatmul.mubr.bf16.gmra.mrb[0].mxu0 %v1396
    %v1520 = vpop.f32.mrb[0].mxu0
    %v1521 = vadd.f32 0.0, %v1520
    %v1522 = vpop.f32.mrb[0].mxu0
    %v1523 = vpop.f32.mrb[0].mxu0
    %v1524 = vadd.f32 0.0, %v1523
    %v1525 = vpop.f32.mrb[0].mxu0
    %1526 = vmatprep.mubr.bf16.mxu0 0
    %1527 = vmatmul.mubr.bf16.gmra.mrb[0].mxu0 %v1405
    %v1528 = vpop.f32.mrb[0].mxu0
    %v1529 = vadd.f32 0.0, %v1528
    %v1530 = vpop.f32.mrb[0].mxu0
    %v1531 = vpop.f32.mrb[0].mxu0
    %v1532 = vadd.f32 0.0, %v1531
    %v1533 = vpop.f32.mrb[0].mxu0
    %1534 = vmatprep.mubr.bf16.mxu0 0
    %1535 = vmatmul.mubr.bf16.gmra.mrb[0].mxu0 %v1414
    %v1536 = vpop.f32.mrb[0].mxu0
    %v1537 = vadd.f32 0.0, %v1536
    %v1538 = vpop.f32.mrb[0].mxu0
    %v1539 = vpop.f32.mrb[0].mxu0
    %v1540 = vadd.f32 0.0, %v1539
    %v1541 = vpop.f32.mrb[0].mxu0
    %1542 = vmatprep.mubr.bf16.mxu0 0
    %1543 = vmatmul.mubr.bf16.gmra.mrb[0].mxu0 %v1423
    %v1544 = vpop.f32.mrb[0].mxu0
    %v1545 = vadd.f32 0.0, %v1544
    %v1546 = vpop.f32.mrb[0].mxu0
    %v1547 = vpop.f32.mrb[0].mxu0
    %v1548 = vadd.f32 0.0, %v1547
    %v1549 = vpop.f32.mrb[0].mxu0
    %1550 = vmatprep.mubr.bf16.mxu0 0
    %1551 = vmatmul.mubr.bf16.gmra.mrb[0].mxu0 %v1432
    %v1552 = vpop.f32.mrb[0].mxu0
    %v1553 = vadd.f32 0.0, %v1552
    %v1554 = vpop.f32.mrb[0].mxu0
    %v1555 = vpop.f32.mrb[0].mxu0
    %v1556 = vadd.f32 0.0, %v1555
    %v1557 = vpop.f32.mrb[0].mxu0
    %1558 = vdwg.mxu0
    %v1559 = vadd.f32 %v1348, %v1521
    %v1560 = vadd.f32 %v1349, %v1524
    %v1561 = vadd.f32 %v1350, %v1529
    %v1562 = vadd.f32 %v1351, %v1532
    %v1563 = vadd.f32 %v1352, %v1537
    %v1564 = vadd.f32 %v1353, %v1540
    %v1565 = vadd.f32 %v1354, %v1545
    %v1566 = vadd.f32 %v1355, %v1548
    %v1567 = vadd.f32 %v1356, %v1553
    %v1568 = vadd.f32 %v1357, %v1556
    %v1569 = vld [vmem:[%s0 + $0x8] sm:$0x8]
    %s1570 = scalar_lea.vmem [#allocation2], 512
    %v1571 = vld [vmem:[%s1570] sm:$0xf]
    %v1572 = vld [vmem:[%s1570 + $0x4] sm:$0xf]
    %v1573 = vld [vmem:[%s1570 + $0x8] sm:$0xf]
    %v1574 = vld [vmem:[%s1570 + $0xc] sm:$0xf]
    %v1575 = vld [vmem:[%s1570 + $0x10] sm:$0xf]
    %v1576 = vld [vmem:[%s1570 + $0x14] sm:$0xf]
    %v1577 = vld [vmem:[%s1570 + $0x18] sm:$0xf]
    %v1578 = vld [vmem:[%s1570 + $0x1c] sm:$0xf]
    %v1579 = vld [vmem:[%s1570 + $0x20] sm:$0xf]
    %v1580 = vld [vmem:[%s1570 + $0x24] sm:$0xf]
    %v1581 = vld [vmem:[%s1570 + $0x28] sm:$0xf]
    %v1582 = vld [vmem:[%s1570 + $0x2c] sm:$0xf]
    %v1583 = vld [vmem:[%s1570 + $0x30] sm:$0xf]
    %v1584 = vld [vmem:[%s1570 + $0x34] sm:$0xf]
    %v1585 = vld [vmem:[%s1570 + $0x38] sm:$0xf]
    %v1586 = vld [vmem:[%s1570 + $0x3c] sm:$0xf]
    %v1588 = vunpack.c.l.b16 %v1569
    %v1589 = vpack.c.b16 %v1195, %v1588
    %vm1590 = vcmask 1044480
    %v1591 = vrot.slane %v1589, 3
    %v1592 = vrot.slane %v1206, 3
    %v1593 = vsel %vm1590, %v1591, %v1592
    %v1594 = vrot.slane %v1207, 3
    %v1595 = vsel %vm1590, %v1592, %v1594
    %v1596 = vrot.slane %v1208, 3
    %v1597 = vsel %vm1590, %v1594, %v1596
    %v1598 = vrot.slane %v1209, 3
    %v1599 = vsel %vm1590, %v1596, %v1598
    %v1600 = vrot.slane %v1378, 3
    %v1601 = vsel %vm1590, %v1598, %v1600
    %v1623 = vunpack.c.l.b16 %v1571
    %v1624 = vunpack.c.l.b16 %v1572
    %v1625 = vunpack.c.l.b16 %v1573
    %v1626 = vunpack.c.l.b16 %v1574
    %v1627 = vunpack.c.l.b16 %v1575
    %v1628 = vunpack.c.l.b16 %v1576
    %v1629 = vunpack.c.l.b16 %v1577
    %v1630 = vunpack.c.l.b16 %v1578
    %v1631 = vunpack.c.l.b16 %v1579
    %v1632 = vunpack.c.l.b16 %v1580
    %v1633 = vunpack.c.l.b16 %v1581
    %v1634 = vunpack.c.l.b16 %v1582
    %v1635 = vunpack.c.l.b16 %v1583
    %v1636 = vunpack.c.l.b16 %v1584
    %v1637 = vunpack.c.l.b16 %v1585
    %v1638 = vunpack.c.l.b16 %v1586
    %v1639 = vpack.c.b16 %v1624, %v1623
    %v1640 = vpack.c.b16 %v1626, %v1625
    %v1641 = vpack.c.b16 %v1628, %v1627
    %v1642 = vpack.c.b16 %v1630, %v1629
    %v1643 = vpack.c.b16 %v1632, %v1631
    %v1644 = vpack.c.b16 %v1634, %v1633
    %v1645 = vpack.c.b16 %v1636, %v1635
    %v1646 = vpack.c.b16 %v1638, %v1637
    %1655 = vmatprep.subr.bf16.mxu0 0
    %1656 = vmatpush1.bf16.msra.mxu0 %v1639
    %1657 = vmatprep.subr.bf16.mxu0 0
    %1658 = vmatpush1.bf16.msra.mxu0 %v1640
    %1659 = vmatprep.subr.bf16.mxu0 0
    %1660 = vmatpush1.bf16.msra.mxu0 %v1641
    %1661 = vmatprep.subr.bf16.mxu0 0
    %1662 = vmatpush1.bf16.msra.mxu0 %v1642
    %1663 = vmatprep.subr.bf16.mxu0 0
    %1664 = vmatpush1.bf16.msra.mxu0 %v1643
    %1665 = vmatprep.subr.bf16.mxu0 0
    %1666 = vmatpush1.bf16.msra.mxu0 %v1644
    %1667 = vmatprep.subr.bf16.mxu0 0
    %1668 = vmatpush1.bf16.msra.mxu0 %v1645
    %1669 = vmatprep.subr.bf16.mxu0 0
    %1670 = vmatpush1.bf16.msra.mxu0 %v1646
    %1671 = vmatprep.subr.bf16.mxu0 0
    %1672 = vmatpush1.bf16.msra.mxu0 0
    %1673 = vmatprep.subr.bf16.mxu0 0
    %1674 = vmatpush1.bf16.msra.mxu0 0
    %1675 = vmatprep.subr.bf16.mxu0 0
    %1676 = vmatpush1.bf16.msra.mxu0 0
    %1677 = vmatprep.subr.bf16.mxu0 0
    %1678 = vmatpush1.bf16.msra.mxu0 0
    %1679 = vmatprep.subr.bf16.mxu0 0
    %1680 = vmatpush1.bf16.msra.mxu0 0
    %1681 = vmatprep.subr.bf16.mxu0 0
    %1682 = vmatpush1.bf16.msra.mxu0 0
    %1683 = vmatprep.subr.bf16.mxu0 0
    %1684 = vmatpush1.bf16.msra.mxu0 0
    %1685 = vmatprep.subr.bf16.mxu0 0
    %1686 = vmatpush1.bf16.msra.mxu0 0
    %1687 = vmatprep.mubr.bf16.mxu0 0
    %1688 = vmatmul.mubr.bf16.gmra.mrb[0].mxu0 %v1593
    %v1689 = vpop.f32.mrb[0].mxu0
    %v1690 = vadd.f32 0.0, %v1689
    %v1691 = vpop.f32.mrb[0].mxu0
    %v1692 = vpop.f32.mrb[0].mxu0
    %v1693 = vadd.f32 0.0, %v1692
    %v1694 = vpop.f32.mrb[0].mxu0
    %1695 = vmatprep.mubr.bf16.mxu0 0
    %1696 = vmatmul.mubr.bf16.gmra.mrb[0].mxu0 %v1595
    %v1697 = vpop.f32.mrb[0].mxu0
    %v1698 = vadd.f32 0.0, %v1697
    %v1699 = vpop.f32.mrb[0].mxu0
    %v1700 = vpop.f32.mrb[0].mxu0
    %v1701 = vadd.f32 0.0, %v1700
    %v1702 = vpop.f32.mrb[0].mxu0
    %1703 = vmatprep.mubr.bf16.mxu0 0
    %1704 = vmatmul.mubr.bf16.gmra.mrb[0].mxu0 %v1597
    %v1705 = vpop.f32.mrb[0].mxu0
    %v1706 = vadd.f32 0.0, %v1705
    %v1707 = vpop.f32.mrb[0].mxu0
    %v1708 = vpop.f32.mrb[0].mxu0
    %v1709 = vadd.f32 0.0, %v1708
    %v1710 = vpop.f32.mrb[0].mxu0
    %1711 = vmatprep.mubr.bf16.mxu0 0
    %1712 = vmatmul.mubr.bf16.gmra.mrb[0].mxu0 %v1599
    %v1713 = vpop.f32.mrb[0].mxu0
    %v1714 = vadd.f32 0.0, %v1713
    %v1715 = vpop.f32.mrb[0].mxu0
    %v1716 = vpop.f32.mrb[0].mxu0
    %v1717 = vadd.f32 0.0, %v1716
    %v1718 = vpop.f32.mrb[0].mxu0
    %1719 = vmatprep.mubr.bf16.mxu0 0
    %1720 = vmatmul.mubr.bf16.gmra.mrb[0].mxu0 %v1601
    %v1721 = vpop.f32.mrb[0].mxu0
    %v1722 = vadd.f32 0.0, %v1721
    %v1723 = vpop.f32.mrb[0].mxu0
    %v1724 = vpop.f32.mrb[0].mxu0
    %v1725 = vadd.f32 0.0, %v1724
    %v1726 = vpop.f32.mrb[0].mxu0
    %1727 = vdwg.mxu0
    %v1728 = vadd.f32 %v1559, %v1690
    %v1729 = vadd.f32 %v1560, %v1693
    %v1730 = vadd.f32 %v1561, %v1698
    %v1731 = vadd.f32 %v1562, %v1701
    %v1732 = vadd.f32 %v1563, %v1706
    %v1733 = vadd.f32 %v1564, %v1709
    %v1734 = vadd.f32 %v1565, %v1714
    %v1735 = vadd.f32 %v1566, %v1717
    %v1736 = vadd.f32 %v1567, %v1722
    %v1737 = vadd.f32 %v1568, %v1725
    %v1739 = vlaneseq
    %v1740 = vshrl.u32 %v1739, 7
    %v1741 = vsub.s32 0, %v1740
    %v1742 = vrot.slane %v32, %v1741
    %v1744 = vmul.f32 %v1728, %v1742
    %v1745 = vmul.f32 %v1729, %v1742
    %v1746 = vmul.f32 %v1730, %v1742
    %v1747 = vmul.f32 %v1731, %v1742
    %v1748 = vmul.f32 %v1732, %v1742
    %v1749 = vmul.f32 %v1733, %v1742
    %v1750 = vmul.f32 %v1734, %v1742
    %v1751 = vmul.f32 %v1735, %v1742
    %v1752 = vmul.f32 %v1736, %v1742
    %v1753 = vmul.f32 %v1737, %v1742
    %v1755 = vlaneseq
    %v1756 = vshrl.u32 %v1755, 7
    %v1757 = vsub.s32 0, %v1756
    %v1758 = vrot.slane %v33, %v1757
    %v1760 = vadd.f32 %v1744, %v1758
    %v1761 = vadd.f32 %v1745, %v1758
    %v1762 = vadd.f32 %v1746, %v1758
    %v1763 = vadd.f32 %v1747, %v1758
    %v1764 = vadd.f32 %v1748, %v1758
    %v1765 = vadd.f32 %v1749, %v1758
    %v1766 = vadd.f32 %v1750, %v1758
    %v1767 = vadd.f32 %v1751, %v1758
    %v1768 = vadd.f32 %v1752, %v1758
    %v1769 = vadd.f32 %v1753, %v1758
    %v1770 = vmax.f32 %v1760, 0.0
    %v1771 = vmax.f32 %v1761, 0.0
    %v1772 = vmax.f32 %v1762, 0.0
    %v1773 = vmax.f32 %v1763, 0.0
    %v1774 = vmax.f32 %v1764, 0.0
    %v1775 = vmax.f32 %v1765, 0.0
    %v1776 = vmax.f32 %v1766, 0.0
    %v1777 = vmax.f32 %v1767, 0.0
    %v1778 = vmax.f32 %v1768, 0.0
    %v1779 = vmax.f32 %v1769, 0.0
    %v1780 = vpack.c.bf16 %v1771, %v1770
    %v1781 = vpack.c.bf16 %v1773, %v1772
    %v1782 = vpack.c.bf16 %v1775, %v1774
    %v1783 = vpack.c.bf16 %v1777, %v1776
    %v1784 = vpack.c.bf16 %v1779, %v1778
    %v1790 = vunpack.c.l.b16 %v1780
    %v1791 = vunpack.c.h.b16 %v1780
    %v1792 = vunpack.c.l.b16 %v1781
    %v1793 = vunpack.c.h.b16 %v1781
    %v1794 = vunpack.c.l.b16 %v1782
    %v1795 = vunpack.c.h.b16 %v1782
    %v1796 = vunpack.c.l.b16 %v1783
    %v1797 = vunpack.c.h.b16 %v1783
    %v1798 = vunpack.c.l.b16 %v1784
    %v1799 = vunpack.c.h.b16 %v1784
    %v1800 = vpack.c.b16 %v1790, %v1790
    %v1801 = vpack.c.b16 %v1791, %v1791
    %v1802 = vpack.c.b16 %v1792, %v1792
    %v1803 = vpack.c.b16 %v1793, %v1793
    %v1804 = vpack.c.b16 %v1794, %v1794
    %v1805 = vpack.c.b16 %v1795, %v1795
    %v1806 = vpack.c.b16 %v1796, %v1796
    %v1807 = vpack.c.b16 %v1797, %v1797
    %v1808 = vpack.c.b16 %v1798, %v1798
    %v1809 = vpack.c.b16 %v1799, %v1799
    %1820 = vst [vmem:[%s4] sm:$0xf] %v1800
    %1821 = vst [vmem:[%s4 + $0x4] sm:$0xf] %v1801
    %1822 = vst [vmem:[%s4 + $0x8] sm:$0xf] %v1802
    %1823 = vst [vmem:[%s4 + $0xc] sm:$0xf] %v1803
    %1824 = vst [vmem:[%s4 + $0x10] sm:$0xf] %v1804
    %1825 = vst [vmem:[%s4 + $0x14] sm:$0xf] %v1805
    %1826 = vst [vmem:[%s4 + $0x18] sm:$0xf] %v1806
    %1827 = vst [vmem:[%s4 + $0x1c] sm:$0xf] %v1807
    %1828 = vst [vmem:[%s4 + $0x20] sm:$0xf] %v1808
    %1829 = vst [vmem:[%s4 + $0x24] sm:$0xf] %v1809
    // Predicated region
    $region22: #{grouped_conv_s1.1} parent=1 // pred_check
      _
    $region23: #{grouped_conv_s1.1} parent=1 // pred_check_branch
      %1831 = sbr.rel (0) target = $region25
    $region24: #{grouped_conv_s1.1} parent=1 // pred_region
      _
    $region25: #{grouped_conv_s1.1} parent=1 // pred_fallthru
      _
    // Predicated region
    $region26: #{grouped_conv_s1.1} parent=1 // pred_check
      _
    $region27: #{grouped_conv_s1.1} parent=1 // pred_check_branch
      %1833 = sbr.rel (0) target = $region29
    $region28: #{grouped_conv_s1.1} parent=1 // pred_region
      _
    $region29: #{grouped_conv_s1.1} parent=1 // pred_fallthru
      _
    %1834 = vsyncpa [#allocation3], 1

</llo_original>
